<compile_context>
chip_gen: v7x
topology: tpu7x:2x2x1
jax: 0.10.0
libtpu: 0.0.40
codegen_flags: <defaults>
</compile_context>

<pallas_src>
import functools

import jax
import jax.numpy as jnp
from jax import lax
from jax.experimental import pallas as pl
from jax.experimental.pallas import tpu as pltpu


C_IN = 128    # conv1 input channels (fixed by the module)
C_MID = 64    # conv1 output / conv2 input channels
C_OUT = 128   # conv2 output channels


# ------------------------------ fused kernel ---------------------------------

def _extra_block_kernel(xd_ref, w1_ref, w2_ref, o_ref, y1_ref, *, Wh, HhWh, H2):
    """conv1(1x1,pad1)+relu -> conv2(3x3,s2,pad1)+relu for one batch element.

    xd_ref: (1, 4*Hh*Wh, 128)  de-interleaved, pre-padded input quadrants
                               (quadrant q = 2*row_parity + col_parity, each
                               quadrant stored row-major with row width Wh)
    w1_ref: (128, 64)          conv1 weight, (c_in, c_out)
    w2_ref: (576, 128)         conv2 weight, rows = (ky*3+kx)*64 + c_in
    o_ref : (1, H2*Wh, 128)    flat output incl. one garbage column per row
    y1_ref: (4*Hh*Wh, 64) f32  VMEM scratch: relu(conv1) on the padded grid
    """
    f32 = jnp.float32

    # ---- conv1 (1x1) + ReLU: one big MXU matmul, result resident in VMEM ----
    # Padded zeros stay zero (no bias), so the whole padded quadrant is valid.
    y1_ref[...] = jnp.maximum(
        jnp.dot(xd_ref[0], w1_ref[...], preferred_element_type=f32), 0.0)

    # ---- conv2 (3x3, stride 2, pad 1) + ReLU, batched over all output rows --
    # Output accumulator uses row width Wh = W2+1 so that every tap (ky,kx) is
    # a single constant-offset slice of its source quadrant:
    #   src_flat_index = dst_flat_index + a_ky*Wh + a_kx
    # (column Wh-1 of the accumulator is garbage and is dropped in the wrapper).
    M = H2 * Wh
    acc = None
    for ky in range(3):
        a_ky, p_ky = divmod(ky, 2)            # padded row = 2*(oy+a_ky) + p_ky
        for kx in range(3):
            a_kx, p_kx = divmod(kx, 2)        # padded col = 2*(ox+a_kx) + p_kx
            q = 2 * p_ky + p_kx
            start = q * HhWh + a_ky * Wh + a_kx
            tap = y1_ref[pl.ds(start, M), :]                          # (M, 64)
            w2t = w2_ref[pl.ds((ky * 3 + kx) * C_MID, C_MID), :]      # (64,128)
            t = jnp.dot(tap, w2t, preferred_element_type=f32)         # (M, 128)
            acc = t if acc is None else acc + t
    o_ref[0] = jnp.maximum(acc, 0.0).astype(o_ref.dtype)


# ------------------------------ forward pass ----------------------------------

@jax.jit
def extra_block_forward(x_nchw, w1, w2):
    """ExtraBlock forward.

    x_nchw: (N, 128, H, W) f32
    w1:     (64, 128, 1, 1)  conv1 weight (PyTorch OIHW)
    w2:     (128, 64, 3, 3)  conv2 weight (PyTorch OIHW)
    returns (N, 128, H2, W2) with H2 = (H+1)//2 + 1 (same for W).
    """
    N, C, H, W = x_nchw.shape
    assert C == C_IN
    H2 = (H + 1) // 2 + 1
    W2 = (W + 1) // 2 + 1
    Hh, Wh = H2 + 2, W2 + 1          # per-quadrant (half-resolution) extents
    HhWh = Hh * Wh

    # --- boundary layout work, all fused into one XLA pass over x ------------
    # Padded grid: conv1 pad (+1) and conv2 pad (+1) -> x offset by +2; then
    # even/odd de-interleave of rows & cols into 4 quadrants of shape (Hh, Wh).
    x = jnp.transpose(x_nchw, (0, 2, 3, 1))                          # NHWC
    xp = jnp.pad(x, ((0, 0), (2, 2 * Hh - 2 - H), (2, 2 * Wh - 2 - W), (0, 0)))
    xd = jnp.stack([xp[:, 0::2, 0::2, :], xp[:, 0::2, 1::2, :],
                    xp[:, 1::2, 0::2, :], xp[:, 1::2, 1::2, :]], axis=1)
    xd = xd.reshape(N, 4 * HhWh, C_IN)                               # flat quads

    w1_mat = jnp.transpose(w1.reshape(C_MID, C_IN))                  # (128, 64)
    w2_mat = jnp.transpose(w2, (2, 3, 1, 0)).reshape(9 * C_MID, C_OUT)  # (576,128)

    kernel = functools.partial(_extra_block_kernel, Wh=Wh, HhWh=HhWh, H2=H2)

    flops = (2 * N * (4 * HhWh) * C_IN * C_MID          # conv1
             + 2 * N * 9 * (H2 * Wh) * C_MID * C_OUT)   # conv2
    bytes_accessed = 4 * (N * 4 * HhWh * C_IN + N * H2 * Wh * C_OUT
                          + C_IN * C_MID + 9 * C_MID * C_OUT)

    # Per-grid-step VMEM footprint (input double-buffer + scratch + acc + out).
    vmem_est = (2 * 4 * HhWh * C_IN * 4 + 4 * HhWh * C_MID * 4
                + 4 * H2 * Wh * C_OUT * 4
                + 2 * (C_IN * C_MID + 9 * C_MID * C_OUT) * 4)
    vmem_limit = int(min(64 * 2**20, max(32 * 2**20, 2 * vmem_est)))

    out_flat = pl.pallas_call(
        kernel,
        out_shape=jax.ShapeDtypeStruct((N, H2 * Wh, C_OUT), x_nchw.dtype),
        grid_spec=pltpu.PrefetchScalarGridSpec(
            num_scalar_prefetch=0,
            grid=(N,),
            in_specs=[
                pl.BlockSpec((1, 4 * HhWh, C_IN), lambda b: (b, 0, 0)),
                pl.BlockSpec((C_IN, C_MID), lambda b: (0, 0)),
                pl.BlockSpec((9 * C_MID, C_OUT), lambda b: (0, 0)),
            ],
            out_specs=pl.BlockSpec((1, H2 * Wh, C_OUT), lambda b: (b, 0, 0)),
            scratch_shapes=[pltpu.VMEM((4 * HhWh, C_MID), jnp.float32)],
        ),
        compiler_params=pltpu.CompilerParams(
            dimension_semantics=("parallel",),
            vmem_limit_bytes=vmem_limit),
        cost_estimate=pl.CostEstimate(
            flops=flops, transcendentals=0, bytes_accessed=bytes_accessed),
    )(xd, w1_mat, w2_mat)

    # Drop the garbage column, back to NCHW.
    out = out_flat.reshape(N, H2, Wh, C_OUT)[:, :, :W2, :]
    return jnp.transpose(out, (0, 3, 1, 2))


# ------------------------------- reference ------------------------------------

def extra_block_reference(x_nchw, w1, w2):
    """Pure-JAX reference using lax.conv (verification only)."""
    dn1 = lax.conv_dimension_numbers(x_nchw.shape, w1.shape, ("NCHW", "OIHW", "NCHW"))
    y = lax.conv_general_dilated(x_nchw, w1, window_strides=(1, 1),
                                 padding=((1, 1), (1, 1)), dimension_numbers=dn1)
    y = jnp.maximum(y, 0.0)
    dn2 = lax.conv_dimension_numbers(y.shape, w2.shape, ("NCHW", "OIHW", "NCHW"))
    y = lax.conv_general_dilated(y, w2, window_strides=(2, 2),
                                 padding=((1, 1), (1, 1)), dimension_numbers=dn2)
    return jnp.maximum(y, 0.0)


# ---------------------------------- main ---------------------------------------

if __name__ == "__main__":
    key = jax.random.PRNGKey(0)
    kx_key, k1, k2 = jax.random.split(key, 3)

    # Channels are fixed at 128 by the module; small spatial size for the check.
    N, C, H, W = 2, 128, 8, 8
    x = jax.random.normal(kx_key, (N, C, H, W), dtype=jnp.float32)
    w1 = jax.random.normal(k1, (C_MID, C_IN, 1, 1), dtype=jnp.float32) * 0.05
    w2 = jax.random.normal(k2, (C_OUT, C_MID, 3, 3), dtype=jnp.float32) * 0.05

    out = jax.block_until_ready(extra_block_forward(x, w1, w2))
    ref = jax.block_until_ready(extra_block_reference(x, w1, w2))

    assert out.shape == ref.shape, (out.shape, ref.shape)
    max_err = float(jnp.max(jnp.abs(out - ref)))
    assert jnp.allclose(out, ref, atol=3e-3, rtol=3e-3), max_err
    print("KERNEL_OK")
</pallas_src>

<mosaic_0001>
module attributes {stable_mosaic.version = 11 : i64} {
  func.func @_extra_block_kernel(%arg0: i32, %arg1: memref<1x168x128xf32, #tpu.memory_space<vmem>>, %arg2: memref<128x64xf32, #tpu.memory_space<vmem>>, %arg3: memref<576x128xf32, #tpu.memory_space<vmem>>, %arg4: memref<1x30x128xf32, #tpu.memory_space<vmem>>, %arg5: memref<168x64xf32, #tpu.memory_space<vmem>>) attributes {dimension_semantics = [#tpu.dimension_semantics<parallel>], iteration_bounds = array<i64: 2>, scalar_prefetch = 0 : i64, scratch_operands = 1 : i64, tpu.core_type = #tpu.core_type<tc>, window_params = [{transform_indices = @transform_0, window_bounds = array<i64: 1, 168, 128>}, {pipeline_mode = #tpu.pipeline_mode<synchronous>, transform_indices = @transform_1, window_bounds = array<i64: 128, 64>}, {pipeline_mode = #tpu.pipeline_mode<synchronous>, transform_indices = @transform_2, window_bounds = array<i64: 576, 128>}, {transform_indices = @transform_3, window_bounds = array<i64: 1, 30, 128>}]} {
    %c0 = arith.constant 0 : index
    %c0_0 = arith.constant 0 : index
    %c0_1 = arith.constant 0 : index
    %0 = vector.load %arg1[%c0, %c0_0, %c0_1] : memref<1x168x128xf32, #tpu.memory_space<vmem>>, vector<1x168x128xf32>
    %1 = vector.shape_cast %0 : vector<1x168x128xf32> to vector<168x128xf32>
    %c0_2 = arith.constant 0 : index
    %c0_3 = arith.constant 0 : index
    %2 = vector.load %arg2[%c0_2, %c0_3] : memref<128x64xf32, #tpu.memory_space<vmem>>, vector<128x64xf32>
    %cst = arith.constant dense<0.000000e+00> : vector<168x64xf32>
    %3 = tpu.matmul %1, %2, %cst {dimension_numbers = #tpu.dot_dimension_numbers<[1], [0], [0], [1], [0, 0, 1, 1], [], []>} : vector<168x128xf32>, vector<128x64xf32>, vector<168x64xf32> -> vector<168x64xf32>
    %cst_4 = arith.constant 0.000000e+00 : f32
    %4 = vector.broadcast %cst_4 : f32 to vector<168x64xf32>
    %5 = arith.maximumf %3, %4 : vector<168x64xf32>
    %c0_5 = arith.constant 0 : index
    %c0_6 = arith.constant 0 : index
    %6 = vector.load %arg5[%c0_5, %c0_6] : memref<168x64xf32, #tpu.memory_space<vmem>>, vector<168x64xf32>
    tpu.vector_store %arg5[%c0_5, %c0_6], %5 {strides = array<i32>} : memref<168x64xf32, #tpu.memory_space<vmem>>, vector<168x64xf32>,
    %c0_7 = arith.constant 0 : index
    %c0_8 = arith.constant 0 : index
    %7 = vector.load %arg5[%c0_7, %c0_8] : memref<168x64xf32, #tpu.memory_space<vmem>>, vector<30x64xf32>
    %c0_9 = arith.constant 0 : index
    %c0_10 = arith.constant 0 : index
    %8 = vector.load %arg3[%c0_9, %c0_10] : memref<576x128xf32, #tpu.memory_space<vmem>>, vector<64x128xf32>
    %cst_11 = arith.constant dense<0.000000e+00> : vector<30x128xf32>
    %9 = tpu.matmul %7, %8, %cst_11 {dimension_numbers = #tpu.dot_dimension_numbers<[1], [0], [0], [1], [0, 0, 1, 1], [], []>} : vector<30x64xf32>, vector<64x128xf32>, vector<30x128xf32> -> vector<30x128xf32>
    %c42 = arith.constant 42 : index
    %c0_12 = arith.constant 0 : index
    %10 = vector.load %arg5[%c42, %c0_12] : memref<168x64xf32, #tpu.memory_space<vmem>>, vector<30x64xf32>
    %c64 = arith.constant 64 : index
    %c0_13 = arith.constant 0 : index
    %11 = vector.load %arg3[%c64, %c0_13] : memref<576x128xf32, #tpu.memory_space<vmem>>, vector<64x128xf32>
    %cst_14 = arith.constant dense<0.000000e+00> : vector<30x128xf32>
    %12 = tpu.matmul %10, %11, %cst_14 {dimension_numbers = #tpu.dot_dimension_numbers<[1], [0], [0], [1], [0, 0, 1, 1], [], []>} : vector<30x64xf32>, vector<64x128xf32>, vector<30x128xf32> -> vector<30x128xf32>
    %13 = arith.addf %9, %12 : vector<30x128xf32>
    %c1 = arith.constant 1 : index
    %c0_15 = arith.constant 0 : index
    %14 = vector.load %arg5[%c1, %c0_15] : memref<168x64xf32, #tpu.memory_space<vmem>>, vector<30x64xf32>
    %c128 = arith.constant 128 : index
    %c0_16 = arith.constant 0 : index
    %15 = vector.load %arg3[%c128, %c0_16] : memref<576x128xf32, #tpu.memory_space<vmem>>, vector<64x128xf32>
    %cst_17 = arith.constant dense<0.000000e+00> : vector<30x128xf32>
    %16 = tpu.matmul %14, %15, %cst_17 {dimension_numbers = #tpu.dot_dimension_numbers<[1], [0], [0], [1], [0, 0, 1, 1], [], []>} : vector<30x64xf32>, vector<64x128xf32>, vector<30x128xf32> -> vector<30x128xf32>
    %17 = arith.addf %13, %16 : vector<30x128xf32>
    %c84 = arith.constant 84 : index
    %c0_18 = arith.constant 0 : index
    %18 = vector.load %arg5[%c84, %c0_18] : memref<168x64xf32, #tpu.memory_space<vmem>>, vector<30x64xf32>
    %c192 = arith.constant 192 : index
    %c0_19 = arith.constant 0 : index
    %19 = vector.load %arg3[%c192, %c0_19] : memref<576x128xf32, #tpu.memory_space<vmem>>, vector<64x128xf32>
    %cst_20 = arith.constant dense<0.000000e+00> : vector<30x128xf32>
    %20 = tpu.matmul %18, %19, %cst_20 {dimension_numbers = #tpu.dot_dimension_numbers<[1], [0], [0], [1], [0, 0, 1, 1], [], []>} : vector<30x64xf32>, vector<64x128xf32>, vector<30x128xf32> -> vector<30x128xf32>
    %21 = arith.addf %17, %20 : vector<30x128xf32>
    %c126 = arith.constant 126 : index
    %c0_21 = arith.constant 0 : index
    %22 = vector.load %arg5[%c126, %c0_21] : memref<168x64xf32, #tpu.memory_space<vmem>>, vector<30x64xf32>
    %c256 = arith.constant 256 : index
    %c0_22 = arith.constant 0 : index
    %23 = vector.load %arg3[%c256, %c0_22] : memref<576x128xf32, #tpu.memory_space<vmem>>, vector<64x128xf32>
    %cst_23 = arith.constant dense<0.000000e+00> : vector<30x128xf32>
    %24 = tpu.matmul %22, %23, %cst_23 {dimension_numbers = #tpu.dot_dimension_numbers<[1], [0], [0], [1], [0, 0, 1, 1], [], []>} : vector<30x64xf32>, vector<64x128xf32>, vector<30x128xf32> -> vector<30x128xf32>
    %25 = arith.addf %21, %24 : vector<30x128xf32>
    %c85 = arith.constant 85 : index
    %c0_24 = arith.constant 0 : index
    %26 = vector.load %arg5[%c85, %c0_24] : memref<168x64xf32, #tpu.memory_space<vmem>>, vector<30x64xf32>
    %c320 = arith.constant 320 : index
    %c0_25 = arith.constant 0 : index
    %27 = vector.load %arg3[%c320, %c0_25] : memref<576x128xf32, #tpu.memory_space<vmem>>, vector<64x128xf32>
    %cst_26 = arith.constant dense<0.000000e+00> : vector<30x128xf32>
    %28 = tpu.matmul %26, %27, %cst_26 {dimension_numbers = #tpu.dot_dimension_numbers<[1], [0], [0], [1], [0, 0, 1, 1], [], []>} : vector<30x64xf32>, vector<64x128xf32>, vector<30x128xf32> -> vector<30x128xf32>
    %29 = arith.addf %25, %28 : vector<30x128xf32>
    %c6 = arith.constant 6 : index
    %c0_27 = arith.constant 0 : index
    %30 = vector.load %arg5[%c6, %c0_27] : memref<168x64xf32, #tpu.memory_space<vmem>>, vector<30x64xf32>
    %c384 = arith.constant 384 : index
    %c0_28 = arith.constant 0 : index
    %31 = vector.load %arg3[%c384, %c0_28] : memref<576x128xf32, #tpu.memory_space<vmem>>, vector<64x128xf32>
    %cst_29 = arith.constant dense<0.000000e+00> : vector<30x128xf32>
    %32 = tpu.matmul %30, %31, %cst_29 {dimension_numbers = #tpu.dot_dimension_numbers<[1], [0], [0], [1], [0, 0, 1, 1], [], []>} : vector<30x64xf32>, vector<64x128xf32>, vector<30x128xf32> -> vector<30x128xf32>
    %33 = arith.addf %29, %32 : vector<30x128xf32>
    %c48 = arith.constant 48 : index
    %c0_30 = arith.constant 0 : index
    %34 = vector.load %arg5[%c48, %c0_30] : memref<168x64xf32, #tpu.memory_space<vmem>>, vector<30x64xf32>
    %c448 = arith.constant 448 : index
    %c0_31 = arith.constant 0 : index
    %35 = vector.load %arg3[%c448, %c0_31] : memref<576x128xf32, #tpu.memory_space<vmem>>, vector<64x128xf32>
    %cst_32 = arith.constant dense<0.000000e+00> : vector<30x128xf32>
    %36 = tpu.matmul %34, %35, %cst_32 {dimension_numbers = #tpu.dot_dimension_numbers<[1], [0], [0], [1], [0, 0, 1, 1], [], []>} : vector<30x64xf32>, vector<64x128xf32>, vector<30x128xf32> -> vector<30x128xf32>
    %37 = arith.addf %33, %36 : vector<30x128xf32>
    %c7 = arith.constant 7 : index
    %c0_33 = arith.constant 0 : index
    %38 = vector.load %arg5[%c7, %c0_33] : memref<168x64xf32, #tpu.memory_space<vmem>>, vector<30x64xf32>
    %c512 = arith.constant 512 : index
    %c0_34 = arith.constant 0 : index
    %39 = vector.load %arg3[%c512, %c0_34] : memref<576x128xf32, #tpu.memory_space<vmem>>, vector<64x128xf32>
    %cst_35 = arith.constant dense<0.000000e+00> : vector<30x128xf32>
    %40 = tpu.matmul %38, %39, %cst_35 {dimension_numbers = #tpu.dot_dimension_numbers<[1], [0], [0], [1], [0, 0, 1, 1], [], []>} : vector<30x64xf32>, vector<64x128xf32>, vector<30x128xf32> -> vector<30x128xf32>
    %41 = arith.addf %37, %40 : vector<30x128xf32>
    %cst_36 = arith.constant 0.000000e+00 : f32
    %42 = vector.broadcast %cst_36 : f32 to vector<30x128xf32>
    %43 = arith.maximumf %41, %42 : vector<30x128xf32>
    %c0_37 = arith.constant 0 : index
    %c0_38 = arith.constant 0 : index
    %c0_39 = arith.constant 0 : index
    %44 = vector.load %arg4[%c0_37, %c0_38, %c0_39] : memref<1x30x128xf32, #tpu.memory_space<vmem>>, vector<1x30x128xf32>
    %45 = vector.shape_cast %44 : vector<1x30x128xf32> to vector<30x128xf32>
    %46 = vector.shape_cast %43 : vector<30x128xf32> to vector<1x30x128xf32>
    tpu.vector_store %arg4[%c0_37, %c0_38, %c0_39], %46 {strides = array<i32>} : memref<1x30x128xf32, #tpu.memory_space<vmem>>, vector<1x30x128xf32>,
    return
  }
  func.func @transform_0(%arg0: i32) -> (i32, i32, i32) {
    %c0_i32 = arith.constant 0 : i32
    %c0_i32_0 = arith.constant 0 : i32
    %c0_i32_1 = arith.constant 0 : i32
    return %arg0, %c0_i32, %c0_i32_0 : i32, i32, i32
  }
  func.func @transform_1(%arg0: i32) -> (i32, i32) {
    %c0_i32 = arith.constant 0 : i32
    %c0_i32_0 = arith.constant 0 : i32
    %c0_i32_1 = arith.constant 0 : i32
    return %c0_i32, %c0_i32_0 : i32, i32
  }
  func.func @transform_2(%arg0: i32) -> (i32, i32) {
    %c0_i32 = arith.constant 0 : i32
    %c0_i32_0 = arith.constant 0 : i32
    %c0_i32_1 = arith.constant 0 : i32
    return %c0_i32, %c0_i32_0 : i32, i32
  }
  func.func @transform_3(%arg0: i32) -> (i32, i32, i32) {
    %c0_i32 = arith.constant 0 : i32
    %c0_i32_0 = arith.constant 0 : i32
    %c0_i32_1 = arith.constant 0 : i32
    return %arg0, %c0_i32, %c0_i32_0 : i32, i32, i32
  }
}

</mosaic_0001>

<llo_original>
// kernel: extra_block_forward.1
$region0: #{extra_block_forward.1}
  #allocation0 [shape = 'u32[]', space=smem, size = 0x4, offset = 0x4, fixed_abs, tag = 'smem constant byte address 0x4 - core index']
  #allocation1 [shape = 'u32[144,128]{1,0:T(1,128)}', space=vmem, size = 0x12000, scoped, tag = 'internal scratch']
  #allocation2 [shape = 'f32[168,64]{1,0:T(8,128)}', space=vmem, size = 0x15000, scoped, tag = 'scratch operand']
  %s0 = inlined_call_operand.vmem [shape: f32[2,168,128], index: 0, kind: input, shape index: {}]
  %s1 = inlined_call_operand.vmem [shape: f32[128,64], index: 1, kind: input, shape index: {}]
  %s2 = inlined_call_operand.vmem [shape: f32[576,128], index: 2, kind: input, shape index: {}]
  %s3 = inlined_call_operand.vmem [shape: f32[2,30,128], index: 3, kind: output, shape index: {}]
  %s4 = sld [smem:[#allocation0]]
  $region45: #{extra_block_forward.1} parent=0
    _
  %s6 = ssub.s32 1, %s4
  %s7 = scalar_select 0, %s6, %s4
  loop: start=0, step=1, limit=4
  $region2: #{extra_block_forward.1} parent=0 // loop_pre_header
    _
  $region3: #{extra_block_forward.1} parent=0 // loop_header
    %s9 = sphi 0, %s13
    %p10 = scmp.ge.s32.totalorder %s9, 4
    %s19 = sphi 0, %s21
    %s22 = sphi 0, %s19
    %s23 = sphi 0, %s22
    %s39 = sphi 0, %s23
    %s43 = sphi 0, %s43
    %s45 = sphi 0, %s43
    %s46 = sphi 0, %s45
    %s60 = sphi 0, %s46
    %s64 = sphi 0, %s64
    %s66 = sphi 0, %s64
    %s67 = sphi 0, %s66
    %s81 = sphi 0, %s67
    %s87 = sphi 0, %s89
    %s90 = sphi 0, %s87
    %s91 = sphi 0, %s90
    %s107 = sphi 0, %s91
  $region4: #{extra_block_forward.1} parent=0 // loop_header_branch
    %12 = sbr.rel (%p10) target = $region8
  $region5: #{extra_block_forward.1} parent=0 // loop_body
    %s14 = ssub.s32 %s9, 1
    %s15 = ssub.s32 %s9, 2
    %s16 = sadd.s32 %s9, 1
    %s17 = ssub.s32 %s9, %s16
    %p18 = scmp.eq.s32.totalorder %s17, 0
    %s20 = sadd.s32 %s19, 1
    %s21 = scalar_select %p18, %s19, %s20
    %p24 = pneg %p18
    %p25 = scmp.eq.s32.totalorder %s9, 1
    %p26 = por %p24, %p25
    %p27 = scmp.ne.s32.totalorder %s19, %s22
    %p28 = scmp.eq.s32.totalorder %s9, 0
    %p29 = por %p27, %p28
    %p30 = scmp.ne.s32.totalorder %s19, %s22
    %p31 = scmp.eq.s32.totalorder %s14, 1
    %p32 = por %p30, %p31
    %p33 = scmp.ne.s32.totalorder %s22, %s23
    %p34 = scmp.eq.s32.totalorder %s14, 0
    %p35 = por %p33, %p34
    %p36 = scmp.ne.s32.totalorder %s22, %s23
    %p37 = scmp.eq.s32.totalorder %s15, 1
    %p38 = por %p36, %p37
    %p40 = scmp.ne.s32.totalorder %s23, %s39
    %p41 = scmp.eq.s32.totalorder %s15, 0
    %p42 = por %p40, %p41
    %s44 = sadd.s32 %s43, 1
    %p47 = scmp.eq.s32.totalorder %s9, 1
    %p48 = scmp.ne.s32.totalorder %s43, %s45
    %p49 = scmp.eq.s32.totalorder %s9, 0
    %p50 = por %p48, %p49
    %p51 = scmp.ne.s32.totalorder %s43, %s45
    %p52 = scmp.eq.s32.totalorder %s14, 1
    %p53 = por %p51, %p52
    %p54 = scmp.ne.s32.totalorder %s45, %s46
    %p55 = scmp.eq.s32.totalorder %s14, 0
    %p56 = por %p54, %p55
    %p57 = scmp.ne.s32.totalorder %s45, %s46
    %p58 = scmp.eq.s32.totalorder %s15, 1
    %p59 = por %p57, %p58
    %p61 = scmp.ne.s32.totalorder %s46, %s60
    %p62 = scmp.eq.s32.totalorder %s15, 0
    %p63 = por %p61, %p62
    %s65 = sadd.s32 %s64, 1
    %p68 = scmp.eq.s32.totalorder %s9, 1
    %p69 = scmp.ne.s32.totalorder %s64, %s66
    %p70 = scmp.eq.s32.totalorder %s9, 0
    %p71 = por %p69, %p70
    %p72 = scmp.ne.s32.totalorder %s64, %s66
    %p73 = scmp.eq.s32.totalorder %s14, 1
    %p74 = por %p72, %p73
    %p75 = scmp.ne.s32.totalorder %s66, %s67
    %p76 = scmp.eq.s32.totalorder %s14, 0
    %p77 = por %p75, %p76
    %p78 = scmp.ne.s32.totalorder %s66, %s67
    %p79 = scmp.eq.s32.totalorder %s15, 1
    %p80 = por %p78, %p79
    %p82 = scmp.ne.s32.totalorder %s67, %s81
    %p83 = scmp.eq.s32.totalorder %s15, 0
    %p84 = por %p82, %p83
    %s85 = ssub.s32 %s9, %s16
    %p86 = scmp.eq.s32.totalorder %s85, 0
    %s88 = sadd.s32 %s87, 1
    %s89 = scalar_select %p86, %s87, %s88
    %p92 = pneg %p86
    %p93 = scmp.eq.s32.totalorder %s9, 1
    %p94 = por %p92, %p93
    %p95 = scmp.ne.s32.totalorder %s87, %s90
    %p96 = scmp.eq.s32.totalorder %s9, 0
    %p97 = por %p95, %p96
    %p98 = scmp.ne.s32.totalorder %s87, %s90
    %p99 = scmp.eq.s32.totalorder %s14, 1
    %p100 = por %p98, %p99
    %p101 = scmp.ne.s32.totalorder %s90, %s91
    %p102 = scmp.eq.s32.totalorder %s14, 0
    %p103 = por %p101, %p102
    %p104 = scmp.ne.s32.totalorder %s90, %s91
    %p105 = scmp.eq.s32.totalorder %s15, 1
    %p106 = por %p104, %p105
    %p108 = scmp.ne.s32.totalorder %s91, %s107
    %p109 = scmp.eq.s32.totalorder %s15, 0
    %p110 = por %p108, %p109
    %p111 = scmp.le.s32.totalorder 1, %s9
    %p112 = scmp.lt.s32.totalorder %s9, 3
    %p113 = pnand %p111, %p112
    %p114 = pneg %p113
    // Predicated region
    $region9: #{extra_block_forward.1} parent=5 // pred_check
      _
    $region10: #{extra_block_forward.1} parent=5 // pred_check_branch
      %116 = sbr.rel (%p113) target = $region12
    $region11: #{extra_block_forward.1} parent=5 // pred_region
      %s117 = ssub.s32 %s9, 1
      // Predicated region
      $region13: #{extra_block_forward.1} parent=11 // pred_check
        %p118 = pneg %p56
      $region14: #{extra_block_forward.1} parent=11 // pred_check_branch
        %120 = sbr.rel (%p118) target = $region16
      $region15: #{extra_block_forward.1} parent=11 // pred_region
        _
      $region16: #{extra_block_forward.1} parent=11 // pred_fallthru
        _
      // Predicated region
      $region17: #{extra_block_forward.1} parent=11 // pred_check
        %p121 = pneg %p77
      $region18: #{extra_block_forward.1} parent=11 // pred_check_branch
        %123 = sbr.rel (%p121) target = $region20
      $region19: #{extra_block_forward.1} parent=11 // pred_region
        _
      $region20: #{extra_block_forward.1} parent=11 // pred_fallthru
        _
    $region12: #{extra_block_forward.1} parent=5 // pred_fallthru
      _
    %p124 = scmp.lt.s32.totalorder %s9, 2
    // Predicated region
    $region21: #{extra_block_forward.1} parent=5 // pred_check
      %p125 = pneg %p124
    $region22: #{extra_block_forward.1} parent=5 // pred_check_branch
      %127 = sbr.rel (%p125) target = $region24
    $region23: #{extra_block_forward.1} parent=5 // pred_region
      // Predicated region
      $region25: #{extra_block_forward.1} parent=23 // pred_check
        %p128 = pneg %p29
      $region26: #{extra_block_forward.1} parent=23 // pred_check_branch
        %130 = sbr.rel (%p128) target = $region28
      $region27: #{extra_block_forward.1} parent=23 // pred_region
        %p131 = scmp.lt.s32.totalorder %s9, 1
        %s132 = scalar_select %p131, %s9, 1
        %s133 = smul.addr %s132, 21
        %s134 = smul.addr %s133, 8
        %s135 = scalar_lea.vmem %s0, %s134
      $region28: #{extra_block_forward.1} parent=23 // pred_fallthru
        _
    $region24: #{extra_block_forward.1} parent=5 // pred_fallthru
      _
    %p136 = scmp.le.s32.totalorder 1, %s9
    %p137 = scmp.lt.s32.totalorder %s9, 3
    %p138 = pnand %p136, %p137
    %p139 = pneg %p138
    // Predicated region
    $region29: #{extra_block_forward.1} parent=5 // pred_check
      _
    $region30: #{extra_block_forward.1} parent=5 // pred_check_branch
      %141 = sbr.rel (%p138) target = $region32
    $region31: #{extra_block_forward.1} parent=5 // pred_region
      %s142 = ssub.s32 %s9, 1
      %p143 = scmp.lt.s32.totalorder %s14, 1
      %s144 = scalar_select %p143, %s14, 1
      %s145 = smul.addr %s144, 21
      %s146 = smul.addr %s145, 8
      %s147 = scalar_lea.vmem %s0, %s146
      %p148 = pneg %p35
      %p149 = pneg %p32
      %p150 = pneg %p56
      %p151 = pneg %p53
      %p152 = pneg %p77
      %p153 = pneg %p74
      %p154 = pneg %p103
      %p155 = pneg %p100
      %p156 = scmp.lt.s32.totalorder %s14, 1
      %s157 = scalar_select %p156, %s14, 1
      %s158 = smul.addr %s157, 4
      %s159 = smul.addr %s158, 8
      %s160 = scalar_lea.vmem %s3, %s159
      %p161 = scmp.lt.s32.totalorder %s14, 1
      %s162 = scalar_select %p161, %s14, 1
      %s163 = smul.addr %s162, 21
      %s164 = smul.addr %s163, 8
      %s165 = scalar_lea.vmem %s0, %s164
      %p166 = scmp.lt.s32.totalorder %s14, 1
      %s167 = scalar_select %p166, %s14, 1
      %s168 = smul.addr %s167, 4
      %s169 = smul.addr %s168, 8
      %s170 = scalar_lea.vmem %s3, %s169
      %v171 = vld [vmem:[%s165] sm:$0xff]
      %v172 = vld [vmem:[%s165 + $0x8] sm:$0xff]
      %v173 = vld [vmem:[%s165 + $0x10] sm:$0xff]
      %v174 = vld [vmem:[%s165 + $0x18] sm:$0xff]
      %v175 = vld [vmem:[%s165 + $0x20] sm:$0xff]
      %v176 = vld [vmem:[%s165 + $0x28] sm:$0xff]
      %v177 = vld [vmem:[%s165 + $0x30] sm:$0xff]
      %v178 = vld [vmem:[%s165 + $0x38] sm:$0xff]
      %v179 = vld [vmem:[%s165 + $0x40] sm:$0xff]
      %v180 = vld [vmem:[%s165 + $0x48] sm:$0xff]
      %v181 = vld [vmem:[%s165 + $0x50] sm:$0xff]
      %v182 = vld [vmem:[%s165 + $0x58] sm:$0xff]
      %v183 = vld [vmem:[%s165 + $0x60] sm:$0xff]
      %v184 = vld [vmem:[%s165 + $0x68] sm:$0xff]
      %v185 = vld [vmem:[%s165 + $0x70] sm:$0xff]
      %v186 = vld [vmem:[%s165 + $0x78] sm:$0xff]
      %v187 = vld [vmem:[%s165 + $0x80] sm:$0xff]
      %v188 = vld [vmem:[%s165 + $0x88] sm:$0xff]
      %v189 = vld [vmem:[%s165 + $0x90] sm:$0xff]
      %v190 = vld [vmem:[%s165 + $0x98] sm:$0xff]
      %v191 = vld [vmem:[%s165 + $0xa0] sm:$0xff]
      %v192 = vld [vmem:[%s1] sm:$0xff]
      %v193 = vld [vmem:[%s1 + $0x8] sm:$0xff]
      %v194 = vld [vmem:[%s1 + $0x10] sm:$0xff]
      %v195 = vld [vmem:[%s1 + $0x18] sm:$0xff]
      %v196 = vld [vmem:[%s1 + $0x20] sm:$0xff]
      %v197 = vld [vmem:[%s1 + $0x28] sm:$0xff]
      %v198 = vld [vmem:[%s1 + $0x30] sm:$0xff]
      %v199 = vld [vmem:[%s1 + $0x38] sm:$0xff]
      %v200 = vld [vmem:[%s1 + $0x40] sm:$0xff]
      %v201 = vld [vmem:[%s1 + $0x48] sm:$0xff]
      %v202 = vld [vmem:[%s1 + $0x50] sm:$0xff]
      %v203 = vld [vmem:[%s1 + $0x58] sm:$0xff]
      %v204 = vld [vmem:[%s1 + $0x60] sm:$0xff]
      %v205 = vld [vmem:[%s1 + $0x68] sm:$0xff]
      %v206 = vld [vmem:[%s1 + $0x70] sm:$0xff]
      %v207 = vld [vmem:[%s1 + $0x78] sm:$0xff]
      %208 = vmatprep.subr.mxu0 0.0
      %209 = vmatpush1.msra.mxu0 %v192
      %210 = vmatprep.subr.mxu0 0.0
      %211 = vmatpush1.msra.mxu0 %v193
      %212 = vmatprep.subr.mxu0 0.0
      %213 = vmatpush1.msra.mxu0 %v194
      %214 = vmatprep.subr.mxu0 0.0
      %215 = vmatpush1.msra.mxu0 %v195
      %216 = vmatprep.subr.mxu0 0.0
      %217 = vmatpush1.msra.mxu0 %v196
      %218 = vmatprep.subr.mxu0 0.0
      %219 = vmatpush1.msra.mxu0 %v197
      %220 = vmatprep.subr.mxu0 0.0
      %221 = vmatpush1.msra.mxu0 %v198
      %222 = vmatprep.subr.mxu0 0.0
      %223 = vmatpush1.msra.mxu0 %v199
      %224 = vmatprep.subr.mxu0 0.0
      %225 = vmatpush1.msra.mxu0 %v200
      %226 = vmatprep.subr.mxu0 0.0
      %227 = vmatpush1.msra.mxu0 %v201
      %228 = vmatprep.subr.mxu0 0.0
      %229 = vmatpush1.msra.mxu0 %v202
      %230 = vmatprep.subr.mxu0 0.0
      %231 = vmatpush1.msra.mxu0 %v203
      %232 = vmatprep.subr.mxu0 0.0
      %233 = vmatpush1.msra.mxu0 %v204
      %234 = vmatprep.subr.mxu0 0.0
      %235 = vmatpush1.msra.mxu0 %v205
      %236 = vmatprep.subr.mxu0 0.0
      %237 = vmatpush1.msra.mxu0 %v206
      %238 = vmatprep.subr.mxu0 0.0
      %239 = vmatpush1.msra.mxu0 %v207
      %240 = vmatprep.subr.mxu0 0.0
      %241 = vmatpush1.msra.mxu0 0.0
      %242 = vmatprep.subr.mxu0 0.0
      %243 = vmatpush1.msra.mxu0 0.0
      %244 = vmatprep.subr.mxu0 0.0
      %245 = vmatpush1.msra.mxu0 0.0
      %246 = vmatprep.subr.mxu0 0.0
      %247 = vmatpush1.msra.mxu0 0.0
      %248 = vmatprep.subr.mxu0 0.0
      %249 = vmatpush1.msra.mxu0 0.0
      %250 = vmatprep.subr.mxu0 0.0
      %251 = vmatpush1.msra.mxu0 0.0
      %252 = vmatprep.subr.mxu0 0.0
      %253 = vmatpush1.msra.mxu0 0.0
      %254 = vmatprep.subr.mxu0 0.0
      %255 = vmatpush1.msra.mxu0 0.0
      %256 = vmatprep.subr.mxu0 0.0
      %257 = vmatpush1.msra.mxu0 0.0
      %258 = vmatprep.subr.mxu0 0.0
      %259 = vmatpush1.msra.mxu0 0.0
      %260 = vmatprep.subr.mxu0 0.0
      %261 = vmatpush1.msra.mxu0 0.0
      %262 = vmatprep.subr.mxu0 0.0
      %263 = vmatpush1.msra.mxu0 0.0
      %264 = vmatprep.subr.mxu0 0.0
      %265 = vmatpush1.msra.mxu0 0.0
      %266 = vmatprep.subr.mxu0 0.0
      %267 = vmatpush1.msra.mxu0 0.0
      %268 = vmatprep.subr.mxu0 0.0
      %269 = vmatpush1.msra.mxu0 0.0
      %270 = vmatprep.subr.mxu0 0.0
      %271 = vmatpush1.msra.mxu0 0.0
      %272 = vmatprep.mubr.f32.mxu0 0.0
      %273 = vmatmul.mubr.f32.gmra.mrb[0].mxu0 %v171
      %v274 = vpop.f32.mrb[0].mxu0
      %v275 = vadd.f32 0.0, %v274
      %v276 = vpop.f32.mrb[0].mxu0
      %277 = vmatprep.mubr.f32.mxu0 0.0
      %278 = vmatmul.mubr.f32.gmra.mrb[0].mxu0 %v172
      %v279 = vpop.f32.mrb[0].mxu0
      %v280 = vadd.f32 0.0, %v279
      %v281 = vpop.f32.mrb[0].mxu0
      %282 = vmatprep.mubr.f32.mxu0 0.0
      %283 = vmatmul.mubr.f32.gmra.mrb[0].mxu0 %v173
      %v284 = vpop.f32.mrb[0].mxu0
      %v285 = vadd.f32 0.0, %v284
      %v286 = vpop.f32.mrb[0].mxu0
      %287 = vmatprep.mubr.f32.mxu0 0.0
      %288 = vmatmul.mubr.f32.gmra.mrb[0].mxu0 %v174
      %v289 = vpop.f32.mrb[0].mxu0
      %v290 = vadd.f32 0.0, %v289
      %v291 = vpop.f32.mrb[0].mxu0
      %292 = vmatprep.mubr.f32.mxu0 0.0
      %293 = vmatmul.mubr.f32.gmra.mrb[0].mxu0 %v175
      %v294 = vpop.f32.mrb[0].mxu0
      %v295 = vadd.f32 0.0, %v294
      %v296 = vpop.f32.mrb[0].mxu0
      %297 = vmatprep.mubr.f32.mxu0 0.0
      %298 = vmatmul.mubr.f32.gmra.mrb[0].mxu0 %v176
      %v299 = vpop.f32.mrb[0].mxu0
      %v300 = vadd.f32 0.0, %v299
      %v301 = vpop.f32.mrb[0].mxu0
      %302 = vmatprep.mubr.f32.mxu0 0.0
      %303 = vmatmul.mubr.f32.gmra.mrb[0].mxu0 %v177
      %v304 = vpop.f32.mrb[0].mxu0
      %v305 = vadd.f32 0.0, %v304
      %v306 = vpop.f32.mrb[0].mxu0
      %307 = vmatprep.mubr.f32.mxu0 0.0
      %308 = vmatmul.mubr.f32.gmra.mrb[0].mxu0 %v178
      %v309 = vpop.f32.mrb[0].mxu0
      %v310 = vadd.f32 0.0, %v309
      %v311 = vpop.f32.mrb[0].mxu0
      %312 = vmatprep.mubr.f32.mxu0 0.0
      %313 = vmatmul.mubr.f32.gmra.mrb[0].mxu0 %v179
      %v314 = vpop.f32.mrb[0].mxu0
      %v315 = vadd.f32 0.0, %v314
      %v316 = vpop.f32.mrb[0].mxu0
      %317 = vmatprep.mubr.f32.mxu0 0.0
      %318 = vmatmul.mubr.f32.gmra.mrb[0].mxu0 %v180
      %v319 = vpop.f32.mrb[0].mxu0
      %v320 = vadd.f32 0.0, %v319
      %v321 = vpop.f32.mrb[0].mxu0
      %322 = vmatprep.mubr.f32.mxu0 0.0
      %323 = vmatmul.mubr.f32.gmra.mrb[0].mxu0 %v181
      %v324 = vpop.f32.mrb[0].mxu0
      %v325 = vadd.f32 0.0, %v324
      %v326 = vpop.f32.mrb[0].mxu0
      %327 = vmatprep.mubr.f32.mxu0 0.0
      %328 = vmatmul.mubr.f32.gmra.mrb[0].mxu0 %v182
      %v329 = vpop.f32.mrb[0].mxu0
      %v330 = vadd.f32 0.0, %v329
      %v331 = vpop.f32.mrb[0].mxu0
      %332 = vmatprep.mubr.f32.mxu0 0.0
      %333 = vmatmul.mubr.f32.gmra.mrb[0].mxu0 %v183
      %v334 = vpop.f32.mrb[0].mxu0
      %v335 = vadd.f32 0.0, %v334
      %v336 = vpop.f32.mrb[0].mxu0
      %337 = vmatprep.mubr.f32.mxu0 0.0
      %338 = vmatmul.mubr.f32.gmra.mrb[0].mxu0 %v184
      %v339 = vpop.f32.mrb[0].mxu0
      %v340 = vadd.f32 0.0, %v339
      %v341 = vpop.f32.mrb[0].mxu0
      %342 = vmatprep.mubr.f32.mxu0 0.0
      %343 = vmatmul.mubr.f32.gmra.mrb[0].mxu0 %v185
      %v344 = vpop.f32.mrb[0].mxu0
      %v345 = vadd.f32 0.0, %v344
      %v346 = vpop.f32.mrb[0].mxu0
      %347 = vmatprep.mubr.f32.mxu0 0.0
      %348 = vmatmul.mubr.f32.gmra.mrb[0].mxu0 %v186
      %v349 = vpop.f32.mrb[0].mxu0
      %v350 = vadd.f32 0.0, %v349
      %v351 = vpop.f32.mrb[0].mxu0
      %352 = vmatprep.mubr.f32.mxu0 0.0
      %353 = vmatmul.mubr.f32.gmra.mrb[0].mxu0 %v187
      %v354 = vpop.f32.mrb[0].mxu0
      %v355 = vadd.f32 0.0, %v354
      %v356 = vpop.f32.mrb[0].mxu0
      %357 = vmatprep.mubr.f32.mxu0 0.0
      %358 = vmatmul.mubr.f32.gmra.mrb[0].mxu0 %v188
      %v359 = vpop.f32.mrb[0].mxu0
      %v360 = vadd.f32 0.0, %v359
      %v361 = vpop.f32.mrb[0].mxu0
      %362 = vmatprep.mubr.f32.mxu0 0.0
      %363 = vmatmul.mubr.f32.gmra.mrb[0].mxu0 %v189
      %v364 = vpop.f32.mrb[0].mxu0
      %v365 = vadd.f32 0.0, %v364
      %v366 = vpop.f32.mrb[0].mxu0
      %367 = vmatprep.mubr.f32.mxu0 0.0
      %368 = vmatmul.mubr.f32.gmra.mrb[0].mxu0 %v190
      %v369 = vpop.f32.mrb[0].mxu0
      %v370 = vadd.f32 0.0, %v369
      %v371 = vpop.f32.mrb[0].mxu0
      %372 = vmatprep.mubr.f32.mxu0 0.0
      %373 = vmatmul.mubr.f32.gmra.mrb[0].mxu0 %v191
      %v374 = vpop.f32.mrb[0].mxu0
      %v375 = vadd.f32 0.0, %v374
      %v376 = vpop.f32.mrb[0].mxu0
      %377 = vdwg.mxu0
      %v378 = vmax.f32 %v275, 0.0
      %v379 = vmax.f32 %v280, 0.0
      %v380 = vmax.f32 %v285, 0.0
      %v381 = vmax.f32 %v290, 0.0
      %v382 = vmax.f32 %v295, 0.0
      %v383 = vmax.f32 %v300, 0.0
      %v384 = vmax.f32 %v305, 0.0
      %v385 = vmax.f32 %v310, 0.0
      %v386 = vmax.f32 %v315, 0.0
      %v387 = vmax.f32 %v320, 0.0
      %v388 = vmax.f32 %v325, 0.0
      %v389 = vmax.f32 %v330, 0.0
      %v390 = vmax.f32 %v335, 0.0
      %v391 = vmax.f32 %v340, 0.0
      %v392 = vmax.f32 %v345, 0.0
      %v393 = vmax.f32 %v350, 0.0
      %v394 = vmax.f32 %v355, 0.0
      %v395 = vmax.f32 %v360, 0.0
      %v396 = vmax.f32 %v365, 0.0
      %v397 = vmax.f32 %v370, 0.0
      %v398 = vmax.f32 %v375, 0.0
      %vm399 = vcmask 523264
      %400 = vst.msk [vmem:[#allocation2] sm:$0xff] %vm399, %v378
      %401 = vst.msk [vmem:[#allocation2 + $0x8] sm:$0xff] %vm399, %v379
      %402 = vst.msk [vmem:[#allocation2 + $0x10] sm:$0xff] %vm399, %v380
      %403 = vst.msk [vmem:[#allocation2 + $0x18] sm:$0xff] %vm399, %v381
      %404 = vst.msk [vmem:[#allocation2 + $0x20] sm:$0xff] %vm399, %v382
      %405 = vst.msk [vmem:[#allocation2 + $0x28] sm:$0xff] %vm399, %v383
      %406 = vst.msk [vmem:[#allocation2 + $0x30] sm:$0xff] %vm399, %v384
      %407 = vst.msk [vmem:[#allocation2 + $0x38] sm:$0xff] %vm399, %v385
      %408 = vst.msk [vmem:[#allocation2 + $0x40] sm:$0xff] %vm399, %v386
      %409 = vst.msk [vmem:[#allocation2 + $0x48] sm:$0xff] %vm399, %v387
      %410 = vst.msk [vmem:[#allocation2 + $0x50] sm:$0xff] %vm399, %v388
      %411 = vst.msk [vmem:[#allocation2 + $0x58] sm:$0xff] %vm399, %v389
      %412 = vst.msk [vmem:[#allocation2 + $0x60] sm:$0xff] %vm399, %v390
      %413 = vst.msk [vmem:[#allocation2 + $0x68] sm:$0xff] %vm399, %v391
      %414 = vst.msk [vmem:[#allocation2 + $0x70] sm:$0xff] %vm399, %v392
      %415 = vst.msk [vmem:[#allocation2 + $0x78] sm:$0xff] %vm399, %v393
      %416 = vst.msk [vmem:[#allocation2 + $0x80] sm:$0xff] %vm399, %v394
      %417 = vst.msk [vmem:[#allocation2 + $0x88] sm:$0xff] %vm399, %v395
      %418 = vst.msk [vmem:[#allocation2 + $0x90] sm:$0xff] %vm399, %v396
      %419 = vst.msk [vmem:[#allocation2 + $0x98] sm:$0xff] %vm399, %v397
      %420 = vst.msk [vmem:[#allocation2 + $0xa0] sm:$0xff] %vm399, %v398
      %v421 = vld [vmem:[#allocation2] sm:$0xff]
      %v422 = vld [vmem:[#allocation2 + $0x8] sm:$0xff]
      %v423 = vld [vmem:[#allocation2 + $0x10] sm:$0xff]
      %v424 = vld [vmem:[#allocation2 + $0x18] sm:$0x3f]
      %v425 = vld [vmem:[%s2] sm:$0xff]
      %v426 = vld [vmem:[%s2 + $0x8] sm:$0xff]
      %v427 = vld [vmem:[%s2 + $0x10] sm:$0xff]
      %v428 = vld [vmem:[%s2 + $0x18] sm:$0xff]
      %v429 = vld [vmem:[%s2 + $0x20] sm:$0xff]
      %v430 = vld [vmem:[%s2 + $0x28] sm:$0xff]
      %v431 = vld [vmem:[%s2 + $0x30] sm:$0xff]
      %v432 = vld [vmem:[%s2 + $0x38] sm:$0xff]
      %v433 = vld [vmem:[#allocation2 + $0x2a] sm:$0xff]
      %v434 = vld [vmem:[#allocation2 + $0x32] sm:$0xff]
      %v435 = vld [vmem:[#allocation2 + $0x3a] sm:$0xff]
      %v436 = vld [vmem:[#allocation2 + $0x42] sm:$0x3f]
      %v437 = vld [vmem:[%s2 + $0x40] sm:$0xff]
      %v438 = vld [vmem:[%s2 + $0x48] sm:$0xff]
      %v439 = vld [vmem:[%s2 + $0x50] sm:$0xff]
      %v440 = vld [vmem:[%s2 + $0x58] sm:$0xff]
      %v441 = vld [vmem:[%s2 + $0x60] sm:$0xff]
      %v442 = vld [vmem:[%s2 + $0x68] sm:$0xff]
      %v443 = vld [vmem:[%s2 + $0x70] sm:$0xff]
      %v444 = vld [vmem:[%s2 + $0x78] sm:$0xff]
      %v446 = vsel %vm399, %v433, 0
      %v449 = vsel %vm399, %v434, 0
      %v452 = vsel %vm399, %v435, 0
      %v455 = vsel %vm399, %v436, 0
      %457 = vmatprep.subr.mxu0 0.0
      %458 = vmatpush1.msra.mxu0 %v437
      %459 = vmatprep.subr.mxu0 0.0
      %460 = vmatpush1.msra.mxu0 %v438
      %461 = vmatprep.subr.mxu0 0.0
      %462 = vmatpush1.msra.mxu0 %v439
      %463 = vmatprep.subr.mxu0 0.0
      %464 = vmatpush1.msra.mxu0 %v440
      %465 = vmatprep.subr.mxu0 0.0
      %466 = vmatpush1.msra.mxu0 %v441
      %467 = vmatprep.subr.mxu0 0.0
      %468 = vmatpush1.msra.mxu0 %v442
      %469 = vmatprep.subr.mxu0 0.0
      %470 = vmatpush1.msra.mxu0 %v443
      %471 = vmatprep.subr.mxu0 0.0
      %472 = vmatpush1.msra.mxu0 %v444
      %473 = vmatprep.subr.mxu0 0.0
      %474 = vmatpush1.msra.mxu0 0.0
      %475 = vmatprep.subr.mxu0 0.0
      %476 = vmatpush1.msra.mxu0 0.0
      %477 = vmatprep.subr.mxu0 0.0
      %478 = vmatpush1.msra.mxu0 0.0
      %479 = vmatprep.subr.mxu0 0.0
      %480 = vmatpush1.msra.mxu0 0.0
      %481 = vmatprep.subr.mxu0 0.0
      %482 = vmatpush1.msra.mxu0 0.0
      %483 = vmatprep.subr.mxu0 0.0
      %484 = vmatpush1.msra.mxu0 0.0
      %485 = vmatprep.subr.mxu0 0.0
      %486 = vmatpush1.msra.mxu0 0.0
      %487 = vmatprep.subr.mxu0 0.0
      %488 = vmatpush1.msra.mxu0 0.0
      %489 = vmatprep.subr.mxu0 0.0
      %490 = vmatpush1.msra.mxu0 0.0
      %491 = vmatprep.subr.mxu0 0.0
      %492 = vmatpush1.msra.mxu0 0.0
      %493 = vmatprep.subr.mxu0 0.0
      %494 = vmatpush1.msra.mxu0 0.0
      %495 = vmatprep.subr.mxu0 0.0
      %496 = vmatpush1.msra.mxu0 0.0
      %497 = vmatprep.subr.mxu0 0.0
      %498 = vmatpush1.msra.mxu0 0.0
      %499 = vmatprep.subr.mxu0 0.0
      %500 = vmatpush1.msra.mxu0 0.0
      %501 = vmatprep.subr.mxu0 0.0
      %502 = vmatpush1.msra.mxu0 0.0
      %503 = vmatprep.subr.mxu0 0.0
      %504 = vmatpush1.msra.mxu0 0.0
      %505 = vmatprep.subr.mxu0 0.0
      %506 = vmatpush1.msra.mxu0 0.0
      %507 = vmatprep.subr.mxu0 0.0
      %508 = vmatpush1.msra.mxu0 0.0
      %509 = vmatprep.subr.mxu0 0.0
      %510 = vmatpush1.msra.mxu0 0.0
      %511 = vmatprep.subr.mxu0 0.0
      %512 = vmatpush1.msra.mxu0 0.0
      %513 = vmatprep.subr.mxu0 0.0
      %514 = vmatpush1.msra.mxu0 0.0
      %515 = vmatprep.subr.mxu0 0.0
      %516 = vmatpush1.msra.mxu0 0.0
      %517 = vmatprep.subr.mxu0 0.0
      %518 = vmatpush1.msra.mxu0 0.0
      %519 = vmatprep.subr.mxu0 0.0
      %520 = vmatpush1.msra.mxu0 0.0
      %521 = vmatprep.mubr.f32.mxu0 0.0
      %522 = vmatmul.mubr.f32.gmra.mrb[0].mxu0 %v446
      %v523 = vpop.f32.mrb[0].mxu0
      %v524 = vadd.f32 0.0, %v523
      %v525 = vpop.f32.mrb[0].mxu0
      %526 = vmatprep.mubr.f32.mxu0 0.0
      %527 = vmatmul.mubr.f32.gmra.mrb[0].mxu0 %v449
      %v528 = vpop.f32.mrb[0].mxu0
      %v529 = vadd.f32 0.0, %v528
      %v530 = vpop.f32.mrb[0].mxu0
      %531 = vmatprep.mubr.f32.mxu0 0.0
      %532 = vmatmul.mubr.f32.gmra.mrb[0].mxu0 %v452
      %v533 = vpop.f32.mrb[0].mxu0
      %v534 = vadd.f32 0.0, %v533
      %v535 = vpop.f32.mrb[0].mxu0
      %536 = vmatprep.mubr.f32.mxu0 0.0
      %537 = vmatmul.mubr.f32.gmra.mrb[0].mxu0 %v455
      %v538 = vpop.f32.mrb[0].mxu0
      %v539 = vadd.f32 0.0, %v538
      %v540 = vpop.f32.mrb[0].mxu0
      %541 = vdwg.mxu0
      %v543 = vsel %vm399, %v421, 0
      %v546 = vsel %vm399, %v422, 0
      %v549 = vsel %vm399, %v423, 0
      %v552 = vsel %vm399, %v424, 0
      %554 = vmatprep.subr.mxu0 0.0
      %555 = vmatpush1.msra.mxu0 %v425
      %556 = vmatprep.subr.mxu0 0.0
      %557 = vmatpush1.msra.mxu0 %v426
      %558 = vmatprep.subr.mxu0 0.0
      %559 = vmatpush1.msra.mxu0 %v427
      %560 = vmatprep.subr.mxu0 0.0
      %561 = vmatpush1.msra.mxu0 %v428
      %562 = vmatprep.subr.mxu0 0.0
      %563 = vmatpush1.msra.mxu0 %v429
      %564 = vmatprep.subr.mxu0 0.0
      %565 = vmatpush1.msra.mxu0 %v430
      %566 = vmatprep.subr.mxu0 0.0
      %567 = vmatpush1.msra.mxu0 %v431
      %568 = vmatprep.subr.mxu0 0.0
      %569 = vmatpush1.msra.mxu0 %v432
      %570 = vmatprep.subr.mxu0 0.0
      %571 = vmatpush1.msra.mxu0 0.0
      %572 = vmatprep.subr.mxu0 0.0
      %573 = vmatpush1.msra.mxu0 0.0
      %574 = vmatprep.subr.mxu0 0.0
      %575 = vmatpush1.msra.mxu0 0.0
      %576 = vmatprep.subr.mxu0 0.0
      %577 = vmatpush1.msra.mxu0 0.0
      %578 = vmatprep.subr.mxu0 0.0
      %579 = vmatpush1.msra.mxu0 0.0
      %580 = vmatprep.subr.mxu0 0.0
      %581 = vmatpush1.msra.mxu0 0.0
      %582 = vmatprep.subr.mxu0 0.0
      %583 = vmatpush1.msra.mxu0 0.0
      %584 = vmatprep.subr.mxu0 0.0
      %585 = vmatpush1.msra.mxu0 0.0
      %586 = vmatprep.subr.mxu0 0.0
      %587 = vmatpush1.msra.mxu0 0.0
      %588 = vmatprep.subr.mxu0 0.0
      %589 = vmatpush1.msra.mxu0 0.0
      %590 = vmatprep.subr.mxu0 0.0
      %591 = vmatpush1.msra.mxu0 0.0
      %592 = vmatprep.subr.mxu0 0.0
      %593 = vmatpush1.msra.mxu0 0.0
      %594 = vmatprep.subr.mxu0 0.0
      %595 = vmatpush1.msra.mxu0 0.0
      %596 = vmatprep.subr.mxu0 0.0
      %597 = vmatpush1.msra.mxu0 0.0
      %598 = vmatprep.subr.mxu0 0.0
      %599 = vmatpush1.msra.mxu0 0.0
      %600 = vmatprep.subr.mxu0 0.0
      %601 = vmatpush1.msra.mxu0 0.0
      %602 = vmatprep.subr.mxu0 0.0
      %603 = vmatpush1.msra.mxu0 0.0
      %604 = vmatprep.subr.mxu0 0.0
      %605 = vmatpush1.msra.mxu0 0.0
      %606 = vmatprep.subr.mxu0 0.0
      %607 = vmatpush1.msra.mxu0 0.0
      %608 = vmatprep.subr.mxu0 0.0
      %609 = vmatpush1.msra.mxu0 0.0
      %610 = vmatprep.subr.mxu0 0.0
      %611 = vmatpush1.msra.mxu0 0.0
      %612 = vmatprep.subr.mxu0 0.0
      %613 = vmatpush1.msra.mxu0 0.0
      %614 = vmatprep.subr.mxu0 0.0
      %615 = vmatpush1.msra.mxu0 0.0
      %616 = vmatprep.subr.mxu0 0.0
      %617 = vmatpush1.msra.mxu0 0.0
      %618 = vmatprep.mubr.f32.mxu0 0.0
      %619 = vmatmul.mubr.f32.gmra.mrb[0].mxu0 %v543
      %v620 = vpop.f32.mrb[0].mxu0
      %v621 = vadd.f32 %v524, %v620
      %v622 = vpop.f32.mrb[0].mxu0
      %623 = vmatprep.mubr.f32.mxu0 0.0
      %624 = vmatmul.mubr.f32.gmra.mrb[0].mxu0 %v546
      %v625 = vpop.f32.mrb[0].mxu0
      %v626 = vadd.f32 %v529, %v625
      %v627 = vpop.f32.mrb[0].mxu0
      %628 = vmatprep.mubr.f32.mxu0 0.0
      %629 = vmatmul.mubr.f32.gmra.mrb[0].mxu0 %v549
      %v630 = vpop.f32.mrb[0].mxu0
      %v631 = vadd.f32 %v534, %v630
      %v632 = vpop.f32.mrb[0].mxu0
      %633 = vmatprep.mubr.f32.mxu0 0.0
      %634 = vmatmul.mubr.f32.gmra.mrb[0].mxu0 %v552
      %v635 = vpop.f32.mrb[0].mxu0
      %v636 = vadd.f32 %v539, %v635
      %v637 = vpop.f32.mrb[0].mxu0
      %638 = vdwg.mxu0
      %v639 = vld [vmem:[#allocation2 + $0x1] sm:$0xff]
      %v640 = vld [vmem:[#allocation2 + $0x9] sm:$0xff]
      %v641 = vld [vmem:[#allocation2 + $0x11] sm:$0xff]
      %v642 = vld [vmem:[#allocation2 + $0x19] sm:$0x3f]
      %v643 = vld [vmem:[%s2 + $0x80] sm:$0xff]
      %v644 = vld [vmem:[%s2 + $0x88] sm:$0xff]
      %v645 = vld [vmem:[%s2 + $0x90] sm:$0xff]
      %v646 = vld [vmem:[%s2 + $0x98] sm:$0xff]
      %v647 = vld [vmem:[%s2 + $0xa0] sm:$0xff]
      %v648 = vld [vmem:[%s2 + $0xa8] sm:$0xff]
      %v649 = vld [vmem:[%s2 + $0xb0] sm:$0xff]
      %v650 = vld [vmem:[%s2 + $0xb8] sm:$0xff]
      %v652 = vsel %vm399, %v639, 0
      %v655 = vsel %vm399, %v640, 0
      %v658 = vsel %vm399, %v641, 0
      %v661 = vsel %vm399, %v642, 0
      %663 = vmatprep.subr.mxu0 0.0
      %664 = vmatpush1.msra.mxu0 %v643
      %665 = vmatprep.subr.mxu0 0.0
      %666 = vmatpush1.msra.mxu0 %v644
      %667 = vmatprep.subr.mxu0 0.0
      %668 = vmatpush1.msra.mxu0 %v645
      %669 = vmatprep.subr.mxu0 0.0
      %670 = vmatpush1.msra.mxu0 %v646
      %671 = vmatprep.subr.mxu0 0.0
      %672 = vmatpush1.msra.mxu0 %v647
      %673 = vmatprep.subr.mxu0 0.0
      %674 = vmatpush1.msra.mxu0 %v648
      %675 = vmatprep.subr.mxu0 0.0
      %676 = vmatpush1.msra.mxu0 %v649
      %677 = vmatprep.subr.mxu0 0.0
      %678 = vmatpush1.msra.mxu0 %v650
      %679 = vmatprep.subr.mxu0 0.0
      %680 = vmatpush1.msra.mxu0 0.0
      %681 = vmatprep.subr.mxu0 0.0
      %682 = vmatpush1.msra.mxu0 0.0
      %683 = vmatprep.subr.mxu0 0.0
      %684 = vmatpush1.msra.mxu0 0.0
      %685 = vmatprep.subr.mxu0 0.0
      %686 = vmatpush1.msra.mxu0 0.0
      %687 = vmatprep.subr.mxu0 0.0
      %688 = vmatpush1.msra.mxu0 0.0
      %689 = vmatprep.subr.mxu0 0.0
      %690 = vmatpush1.msra.mxu0 0.0
      %691 = vmatprep.subr.mxu0 0.0
      %692 = vmatpush1.msra.mxu0 0.0
      %693 = vmatprep.subr.mxu0 0.0
      %694 = vmatpush1.msra.mxu0 0.0
      %695 = vmatprep.subr.mxu0 0.0
      %696 = vmatpush1.msra.mxu0 0.0
      %697 = vmatprep.subr.mxu0 0.0
      %698 = vmatpush1.msra.mxu0 0.0
      %699 = vmatprep.subr.mxu0 0.0
      %700 = vmatpush1.msra.mxu0 0.0
      %701 = vmatprep.subr.mxu0 0.0
      %702 = vmatpush1.msra.mxu0 0.0
      %703 = vmatprep.subr.mxu0 0.0
      %704 = vmatpush1.msra.mxu0 0.0
      %705 = vmatprep.subr.mxu0 0.0
      %706 = vmatpush1.msra.mxu0 0.0
      %707 = vmatprep.subr.mxu0 0.0
      %708 = vmatpush1.msra.mxu0 0.0
      %709 = vmatprep.subr.mxu0 0.0
      %710 = vmatpush1.msra.mxu0 0.0
      %711 = vmatprep.subr.mxu0 0.0
      %712 = vmatpush1.msra.mxu0 0.0
      %713 = vmatprep.subr.mxu0 0.0
      %714 = vmatpush1.msra.mxu0 0.0
      %715 = vmatprep.subr.mxu0 0.0
      %716 = vmatpush1.msra.mxu0 0.0
      %717 = vmatprep.subr.mxu0 0.0
      %718 = vmatpush1.msra.mxu0 0.0
      %719 = vmatprep.subr.mxu0 0.0
      %720 = vmatpush1.msra.mxu0 0.0
      %721 = vmatprep.subr.mxu0 0.0
      %722 = vmatpush1.msra.mxu0 0.0
      %723 = vmatprep.subr.mxu0 0.0
      %724 = vmatpush1.msra.mxu0 0.0
      %725 = vmatprep.subr.mxu0 0.0
      %726 = vmatpush1.msra.mxu0 0.0
      %727 = vmatprep.mubr.f32.mxu0 0.0
      %728 = vmatmul.mubr.f32.gmra.mrb[0].mxu0 %v652
      %v729 = vpop.f32.mrb[0].mxu0
      %v730 = vadd.f32 0.0, %v729
      %v731 = vpop.f32.mrb[0].mxu0
      %732 = vmatprep.mubr.f32.mxu0 0.0
      %733 = vmatmul.mubr.f32.gmra.mrb[0].mxu0 %v655
      %v734 = vpop.f32.mrb[0].mxu0
      %v735 = vadd.f32 0.0, %v734
      %v736 = vpop.f32.mrb[0].mxu0
      %737 = vmatprep.mubr.f32.mxu0 0.0
      %738 = vmatmul.mubr.f32.gmra.mrb[0].mxu0 %v658
      %v739 = vpop.f32.mrb[0].mxu0
      %v740 = vadd.f32 0.0, %v739
      %v741 = vpop.f32.mrb[0].mxu0
      %742 = vmatprep.mubr.f32.mxu0 0.0
      %743 = vmatmul.mubr.f32.gmra.mrb[0].mxu0 %v661
      %v744 = vpop.f32.mrb[0].mxu0
      %v745 = vadd.f32 0.0, %v744
      %v746 = vpop.f32.mrb[0].mxu0
      %747 = vdwg.mxu0
      %v748 = vadd.f32 %v621, %v730
      %v749 = vadd.f32 %v626, %v735
      %v750 = vadd.f32 %v631, %v740
      %v751 = vadd.f32 %v636, %v745
      %v752 = vld [vmem:[#allocation2 + $0x54] sm:$0xff]
      %v753 = vld [vmem:[#allocation2 + $0x5c] sm:$0xff]
      %v754 = vld [vmem:[#allocation2 + $0x64] sm:$0xff]
      %v755 = vld [vmem:[#allocation2 + $0x6c] sm:$0x3f]
      %v756 = vld [vmem:[%s2 + $0xc0] sm:$0xff]
      %v757 = vld [vmem:[%s2 + $0xc8] sm:$0xff]
      %v758 = vld [vmem:[%s2 + $0xd0] sm:$0xff]
      %v759 = vld [vmem:[%s2 + $0xd8] sm:$0xff]
      %v760 = vld [vmem:[%s2 + $0xe0] sm:$0xff]
      %v761 = vld [vmem:[%s2 + $0xe8] sm:$0xff]
      %v762 = vld [vmem:[%s2 + $0xf0] sm:$0xff]
      %v763 = vld [vmem:[%s2 + $0xf8] sm:$0xff]
      %v765 = vsel %vm399, %v752, 0
      %v768 = vsel %vm399, %v753, 0
      %v771 = vsel %vm399, %v754, 0
      %v774 = vsel %vm399, %v755, 0
      %776 = vmatprep.subr.mxu0 0.0
      %777 = vmatpush1.msra.mxu0 %v756
      %778 = vmatprep.subr.mxu0 0.0
      %779 = vmatpush1.msra.mxu0 %v757
      %780 = vmatprep.subr.mxu0 0.0
      %781 = vmatpush1.msra.mxu0 %v758
      %782 = vmatprep.subr.mxu0 0.0
      %783 = vmatpush1.msra.mxu0 %v759
      %784 = vmatprep.subr.mxu0 0.0
      %785 = vmatpush1.msra.mxu0 %v760
      %786 = vmatprep.subr.mxu0 0.0
      %787 = vmatpush1.msra.mxu0 %v761
      %788 = vmatprep.subr.mxu0 0.0
      %789 = vmatpush1.msra.mxu0 %v762
      %790 = vmatprep.subr.mxu0 0.0
      %791 = vmatpush1.msra.mxu0 %v763
      %792 = vmatprep.subr.mxu0 0.0
      %793 = vmatpush1.msra.mxu0 0.0
      %794 = vmatprep.subr.mxu0 0.0
      %795 = vmatpush1.msra.mxu0 0.0
      %796 = vmatprep.subr.mxu0 0.0
      %797 = vmatpush1.msra.mxu0 0.0
      %798 = vmatprep.subr.mxu0 0.0
      %799 = vmatpush1.msra.mxu0 0.0
      %800 = vmatprep.subr.mxu0 0.0
      %801 = vmatpush1.msra.mxu0 0.0
      %802 = vmatprep.subr.mxu0 0.0
      %803 = vmatpush1.msra.mxu0 0.0
      %804 = vmatprep.subr.mxu0 0.0
      %805 = vmatpush1.msra.mxu0 0.0
      %806 = vmatprep.subr.mxu0 0.0
      %807 = vmatpush1.msra.mxu0 0.0
      %808 = vmatprep.subr.mxu0 0.0
      %809 = vmatpush1.msra.mxu0 0.0
      %810 = vmatprep.subr.mxu0 0.0
      %811 = vmatpush1.msra.mxu0 0.0
      %812 = vmatprep.subr.mxu0 0.0
      %813 = vmatpush1.msra.mxu0 0.0
      %814 = vmatprep.subr.mxu0 0.0
      %815 = vmatpush1.msra.mxu0 0.0
      %816 = vmatprep.subr.mxu0 0.0
      %817 = vmatpush1.msra.mxu0 0.0
      %818 = vmatprep.subr.mxu0 0.0
      %819 = vmatpush1.msra.mxu0 0.0
      %820 = vmatprep.subr.mxu0 0.0
      %821 = vmatpush1.msra.mxu0 0.0
      %822 = vmatprep.subr.mxu0 0.0
      %823 = vmatpush1.msra.mxu0 0.0
      %824 = vmatprep.subr.mxu0 0.0
      %825 = vmatpush1.msra.mxu0 0.0
      %826 = vmatprep.subr.mxu0 0.0
      %827 = vmatpush1.msra.mxu0 0.0
      %828 = vmatprep.subr.mxu0 0.0
      %829 = vmatpush1.msra.mxu0 0.0
      %830 = vmatprep.subr.mxu0 0.0
      %831 = vmatpush1.msra.mxu0 0.0
      %832 = vmatprep.subr.mxu0 0.0
      %833 = vmatpush1.msra.mxu0 0.0
      %834 = vmatprep.subr.mxu0 0.0
      %835 = vmatpush1.msra.mxu0 0.0
      %836 = vmatprep.subr.mxu0 0.0
      %837 = vmatpush1.msra.mxu0 0.0
      %838 = vmatprep.subr.mxu0 0.0
      %839 = vmatpush1.msra.mxu0 0.0
      %840 = vmatprep.mubr.f32.mxu0 0.0
      %841 = vmatmul.mubr.f32.gmra.mrb[0].mxu0 %v765
      %v842 = vpop.f32.mrb[0].mxu0
      %v843 = vadd.f32 0.0, %v842
      %v844 = vpop.f32.mrb[0].mxu0
      %845 = vmatprep.mubr.f32.mxu0 0.0
      %846 = vmatmul.mubr.f32.gmra.mrb[0].mxu0 %v768
      %v847 = vpop.f32.mrb[0].mxu0
      %v848 = vadd.f32 0.0, %v847
      %v849 = vpop.f32.mrb[0].mxu0
      %850 = vmatprep.mubr.f32.mxu0 0.0
      %851 = vmatmul.mubr.f32.gmra.mrb[0].mxu0 %v771
      %v852 = vpop.f32.mrb[0].mxu0
      %v853 = vadd.f32 0.0, %v852
      %v854 = vpop.f32.mrb[0].mxu0
      %855 = vmatprep.mubr.f32.mxu0 0.0
      %856 = vmatmul.mubr.f32.gmra.mrb[0].mxu0 %v774
      %v857 = vpop.f32.mrb[0].mxu0
      %v858 = vadd.f32 0.0, %v857
      %v859 = vpop.f32.mrb[0].mxu0
      %860 = vdwg.mxu0
      %v861 = vadd.f32 %v748, %v843
      %v862 = vadd.f32 %v749, %v848
      %v863 = vadd.f32 %v750, %v853
      %v864 = vadd.f32 %v751, %v858
      %v865 = vld [vmem:[#allocation2 + $0x7e] sm:$0xff]
      %v866 = vld [vmem:[#allocation2 + $0x86] sm:$0xff]
      %v867 = vld [vmem:[#allocation2 + $0x8e] sm:$0xff]
      %v868 = vld [vmem:[#allocation2 + $0x96] sm:$0x3f]
      %v869 = vld [vmem:[%s2 + $0x100] sm:$0xff]
      %v870 = vld [vmem:[%s2 + $0x108] sm:$0xff]
      %v871 = vld [vmem:[%s2 + $0x110] sm:$0xff]
      %v872 = vld [vmem:[%s2 + $0x118] sm:$0xff]
      %v873 = vld [vmem:[%s2 + $0x120] sm:$0xff]
      %v874 = vld [vmem:[%s2 + $0x128] sm:$0xff]
      %v875 = vld [vmem:[%s2 + $0x130] sm:$0xff]
      %v876 = vld [vmem:[%s2 + $0x138] sm:$0xff]
      %v878 = vsel %vm399, %v865, 0
      %v881 = vsel %vm399, %v866, 0
      %v884 = vsel %vm399, %v867, 0
      %v887 = vsel %vm399, %v868, 0
      %889 = vmatprep.subr.mxu0 0.0
      %890 = vmatpush1.msra.mxu0 %v869
      %891 = vmatprep.subr.mxu0 0.0
      %892 = vmatpush1.msra.mxu0 %v870
      %893 = vmatprep.subr.mxu0 0.0
      %894 = vmatpush1.msra.mxu0 %v871
      %895 = vmatprep.subr.mxu0 0.0
      %896 = vmatpush1.msra.mxu0 %v872
      %897 = vmatprep.subr.mxu0 0.0
      %898 = vmatpush1.msra.mxu0 %v873
      %899 = vmatprep.subr.mxu0 0.0
      %900 = vmatpush1.msra.mxu0 %v874
      %901 = vmatprep.subr.mxu0 0.0
      %902 = vmatpush1.msra.mxu0 %v875
      %903 = vmatprep.subr.mxu0 0.0
      %904 = vmatpush1.msra.mxu0 %v876
      %905 = vmatprep.subr.mxu0 0.0
      %906 = vmatpush1.msra.mxu0 0.0
      %907 = vmatprep.subr.mxu0 0.0
      %908 = vmatpush1.msra.mxu0 0.0
      %909 = vmatprep.subr.mxu0 0.0
      %910 = vmatpush1.msra.mxu0 0.0
      %911 = vmatprep.subr.mxu0 0.0
      %912 = vmatpush1.msra.mxu0 0.0
      %913 = vmatprep.subr.mxu0 0.0
      %914 = vmatpush1.msra.mxu0 0.0
      %915 = vmatprep.subr.mxu0 0.0
      %916 = vmatpush1.msra.mxu0 0.0
      %917 = vmatprep.subr.mxu0 0.0
      %918 = vmatpush1.msra.mxu0 0.0
      %919 = vmatprep.subr.mxu0 0.0
      %920 = vmatpush1.msra.mxu0 0.0
      %921 = vmatprep.subr.mxu0 0.0
      %922 = vmatpush1.msra.mxu0 0.0
      %923 = vmatprep.subr.mxu0 0.0
      %924 = vmatpush1.msra.mxu0 0.0
      %925 = vmatprep.subr.mxu0 0.0
      %926 = vmatpush1.msra.mxu0 0.0
      %927 = vmatprep.subr.mxu0 0.0
      %928 = vmatpush1.msra.mxu0 0.0
      %929 = vmatprep.subr.mxu0 0.0
      %930 = vmatpush1.msra.mxu0 0.0
      %931 = vmatprep.subr.mxu0 0.0
      %932 = vmatpush1.msra.mxu0 0.0
      %933 = vmatprep.subr.mxu0 0.0
      %934 = vmatpush1.msra.mxu0 0.0
      %935 = vmatprep.subr.mxu0 0.0
      %936 = vmatpush1.msra.mxu0 0.0
      %937 = vmatprep.subr.mxu0 0.0
      %938 = vmatpush1.msra.mxu0 0.0
      %939 = vmatprep.subr.mxu0 0.0
      %940 = vmatpush1.msra.mxu0 0.0
      %941 = vmatprep.subr.mxu0 0.0
      %942 = vmatpush1.msra.mxu0 0.0
      %943 = vmatprep.subr.mxu0 0.0
      %944 = vmatpush1.msra.mxu0 0.0
      %945 = vmatprep.subr.mxu0 0.0
      %946 = vmatpush1.msra.mxu0 0.0
      %947 = vmatprep.subr.mxu0 0.0
      %948 = vmatpush1.msra.mxu0 0.0
      %949 = vmatprep.subr.mxu0 0.0
      %950 = vmatpush1.msra.mxu0 0.0
      %951 = vmatprep.subr.mxu0 0.0
      %952 = vmatpush1.msra.mxu0 0.0
      %953 = vmatprep.mubr.f32.mxu0 0.0
      %954 = vmatmul.mubr.f32.gmra.mrb[0].mxu0 %v878
      %v955 = vpop.f32.mrb[0].mxu0
      %v956 = vadd.f32 0.0, %v955
      %v957 = vpop.f32.mrb[0].mxu0
      %958 = vmatprep.mubr.f32.mxu0 0.0
      %959 = vmatmul.mubr.f32.gmra.mrb[0].mxu0 %v881
      %v960 = vpop.f32.mrb[0].mxu0
      %v961 = vadd.f32 0.0, %v960
      %v962 = vpop.f32.mrb[0].mxu0
      %963 = vmatprep.mubr.f32.mxu0 0.0
      %964 = vmatmul.mubr.f32.gmra.mrb[0].mxu0 %v884
      %v965 = vpop.f32.mrb[0].mxu0
      %v966 = vadd.f32 0.0, %v965
      %v967 = vpop.f32.mrb[0].mxu0
      %968 = vmatprep.mubr.f32.mxu0 0.0
      %969 = vmatmul.mubr.f32.gmra.mrb[0].mxu0 %v887
      %v970 = vpop.f32.mrb[0].mxu0
      %v971 = vadd.f32 0.0, %v970
      %v972 = vpop.f32.mrb[0].mxu0
      %973 = vdwg.mxu0
      %v974 = vadd.f32 %v861, %v956
      %v975 = vadd.f32 %v862, %v961
      %v976 = vadd.f32 %v863, %v966
      %v977 = vadd.f32 %v864, %v971
      %v978 = vld [vmem:[#allocation2 + $0x55] sm:$0xff]
      %v979 = vld [vmem:[#allocation2 + $0x5d] sm:$0xff]
      %v980 = vld [vmem:[#allocation2 + $0x65] sm:$0xff]
      %v981 = vld [vmem:[#allocation2 + $0x6d] sm:$0x3f]
      %v982 = vld [vmem:[%s2 + $0x140] sm:$0xff]
      %v983 = vld [vmem:[%s2 + $0x148] sm:$0xff]
      %v984 = vld [vmem:[%s2 + $0x150] sm:$0xff]
      %v985 = vld [vmem:[%s2 + $0x158] sm:$0xff]
      %v986 = vld [vmem:[%s2 + $0x160] sm:$0xff]
      %v987 = vld [vmem:[%s2 + $0x168] sm:$0xff]
      %v988 = vld [vmem:[%s2 + $0x170] sm:$0xff]
      %v989 = vld [vmem:[%s2 + $0x178] sm:$0xff]
      %v991 = vsel %vm399, %v978, 0
      %v994 = vsel %vm399, %v979, 0
      %v997 = vsel %vm399, %v980, 0
      %v1000 = vsel %vm399, %v981, 0
      %1002 = vmatprep.subr.mxu0 0.0
      %1003 = vmatpush1.msra.mxu0 %v982
      %1004 = vmatprep.subr.mxu0 0.0
      %1005 = vmatpush1.msra.mxu0 %v983
      %1006 = vmatprep.subr.mxu0 0.0
      %1007 = vmatpush1.msra.mxu0 %v984
      %1008 = vmatprep.subr.mxu0 0.0
      %1009 = vmatpush1.msra.mxu0 %v985
      %1010 = vmatprep.subr.mxu0 0.0
      %1011 = vmatpush1.msra.mxu0 %v986
      %1012 = vmatprep.subr.mxu0 0.0
      %1013 = vmatpush1.msra.mxu0 %v987
      %1014 = vmatprep.subr.mxu0 0.0
      %1015 = vmatpush1.msra.mxu0 %v988
      %1016 = vmatprep.subr.mxu0 0.0
      %1017 = vmatpush1.msra.mxu0 %v989
      %1018 = vmatprep.subr.mxu0 0.0
      %1019 = vmatpush1.msra.mxu0 0.0
      %1020 = vmatprep.subr.mxu0 0.0
      %1021 = vmatpush1.msra.mxu0 0.0
      %1022 = vmatprep.subr.mxu0 0.0
      %1023 = vmatpush1.msra.mxu0 0.0
      %1024 = vmatprep.subr.mxu0 0.0
      %1025 = vmatpush1.msra.mxu0 0.0
      %1026 = vmatprep.subr.mxu0 0.0
      %1027 = vmatpush1.msra.mxu0 0.0
      %1028 = vmatprep.subr.mxu0 0.0
      %1029 = vmatpush1.msra.mxu0 0.0
      %1030 = vmatprep.subr.mxu0 0.0
      %1031 = vmatpush1.msra.mxu0 0.0
      %1032 = vmatprep.subr.mxu0 0.0
      %1033 = vmatpush1.msra.mxu0 0.0
      %1034 = vmatprep.subr.mxu0 0.0
      %1035 = vmatpush1.msra.mxu0 0.0
      %1036 = vmatprep.subr.mxu0 0.0
      %1037 = vmatpush1.msra.mxu0 0.0
      %1038 = vmatprep.subr.mxu0 0.0
      %1039 = vmatpush1.msra.mxu0 0.0
      %1040 = vmatprep.subr.mxu0 0.0
      %1041 = vmatpush1.msra.mxu0 0.0
      %1042 = vmatprep.subr.mxu0 0.0
      %1043 = vmatpush1.msra.mxu0 0.0
      %1044 = vmatprep.subr.mxu0 0.0
      %1045 = vmatpush1.msra.mxu0 0.0
      %1046 = vmatprep.subr.mxu0 0.0
      %1047 = vmatpush1.msra.mxu0 0.0
      %1048 = vmatprep.subr.mxu0 0.0
      %1049 = vmatpush1.msra.mxu0 0.0
      %1050 = vmatprep.subr.mxu0 0.0
      %1051 = vmatpush1.msra.mxu0 0.0
      %1052 = vmatprep.subr.mxu0 0.0
      %1053 = vmatpush1.msra.mxu0 0.0
      %1054 = vmatprep.subr.mxu0 0.0
      %1055 = vmatpush1.msra.mxu0 0.0
      %1056 = vmatprep.subr.mxu0 0.0
      %1057 = vmatpush1.msra.mxu0 0.0
      %1058 = vmatprep.subr.mxu0 0.0
      %1059 = vmatpush1.msra.mxu0 0.0
      %1060 = vmatprep.subr.mxu0 0.0
      %1061 = vmatpush1.msra.mxu0 0.0
      %1062 = vmatprep.subr.mxu0 0.0
      %1063 = vmatpush1.msra.mxu0 0.0
      %1064 = vmatprep.subr.mxu0 0.0
      %1065 = vmatpush1.msra.mxu0 0.0
      %1066 = vmatprep.mubr.f32.mxu0 0.0
      %1067 = vmatmul.mubr.f32.gmra.mrb[0].mxu0 %v991
      %v1068 = vpop.f32.mrb[0].mxu0
      %v1069 = vadd.f32 0.0, %v1068
      %v1070 = vpop.f32.mrb[0].mxu0
      %1071 = vmatprep.mubr.f32.mxu0 0.0
      %1072 = vmatmul.mubr.f32.gmra.mrb[0].mxu0 %v994
      %v1073 = vpop.f32.mrb[0].mxu0
      %v1074 = vadd.f32 0.0, %v1073
      %v1075 = vpop.f32.mrb[0].mxu0
      %1076 = vmatprep.mubr.f32.mxu0 0.0
      %1077 = vmatmul.mubr.f32.gmra.mrb[0].mxu0 %v997
      %v1078 = vpop.f32.mrb[0].mxu0
      %v1079 = vadd.f32 0.0, %v1078
      %v1080 = vpop.f32.mrb[0].mxu0
      %1081 = vmatprep.mubr.f32.mxu0 0.0
      %1082 = vmatmul.mubr.f32.gmra.mrb[0].mxu0 %v1000
      %v1083 = vpop.f32.mrb[0].mxu0
      %v1084 = vadd.f32 0.0, %v1083
      %v1085 = vpop.f32.mrb[0].mxu0
      %1086 = vdwg.mxu0
      %v1087 = vadd.f32 %v974, %v1069
      %v1088 = vadd.f32 %v975, %v1074
      %v1089 = vadd.f32 %v976, %v1079
      %v1090 = vadd.f32 %v977, %v1084
      %v1091 = vld [vmem:[#allocation2 + $0x6] sm:$0xff]
      %v1092 = vld [vmem:[#allocation2 + $0xe] sm:$0xff]
      %v1093 = vld [vmem:[#allocation2 + $0x16] sm:$0xff]
      %v1094 = vld [vmem:[#allocation2 + $0x1e] sm:$0x3f]
      %v1095 = vld [vmem:[%s2 + $0x180] sm:$0xff]
      %v1096 = vld [vmem:[%s2 + $0x188] sm:$0xff]
      %v1097 = vld [vmem:[%s2 + $0x190] sm:$0xff]
      %v1098 = vld [vmem:[%s2 + $0x198] sm:$0xff]
      %v1099 = vld [vmem:[%s2 + $0x1a0] sm:$0xff]
      %v1100 = vld [vmem:[%s2 + $0x1a8] sm:$0xff]
      %v1101 = vld [vmem:[%s2 + $0x1b0] sm:$0xff]
      %v1102 = vld [vmem:[%s2 + $0x1b8] sm:$0xff]
      %v1104 = vsel %vm399, %v1091, 0
      %v1107 = vsel %vm399, %v1092, 0
      %v1110 = vsel %vm399, %v1093, 0
      %v1113 = vsel %vm399, %v1094, 0
      %1115 = vmatprep.subr.mxu0 0.0
      %1116 = vmatpush1.msra.mxu0 %v1095
      %1117 = vmatprep.subr.mxu0 0.0
      %1118 = vmatpush1.msra.mxu0 %v1096
      %1119 = vmatprep.subr.mxu0 0.0
      %1120 = vmatpush1.msra.mxu0 %v1097
      %1121 = vmatprep.subr.mxu0 0.0
      %1122 = vmatpush1.msra.mxu0 %v1098
      %1123 = vmatprep.subr.mxu0 0.0
      %1124 = vmatpush1.msra.mxu0 %v1099
      %1125 = vmatprep.subr.mxu0 0.0
      %1126 = vmatpush1.msra.mxu0 %v1100
      %1127 = vmatprep.subr.mxu0 0.0
      %1128 = vmatpush1.msra.mxu0 %v1101
      %1129 = vmatprep.subr.mxu0 0.0
      %1130 = vmatpush1.msra.mxu0 %v1102
      %1131 = vmatprep.subr.mxu0 0.0
      %1132 = vmatpush1.msra.mxu0 0.0
      %1133 = vmatprep.subr.mxu0 0.0
      %1134 = vmatpush1.msra.mxu0 0.0
      %1135 = vmatprep.subr.mxu0 0.0
      %1136 = vmatpush1.msra.mxu0 0.0
      %1137 = vmatprep.subr.mxu0 0.0
      %1138 = vmatpush1.msra.mxu0 0.0
      %1139 = vmatprep.subr.mxu0 0.0
      %1140 = vmatpush1.msra.mxu0 0.0
      %1141 = vmatprep.subr.mxu0 0.0
      %1142 = vmatpush1.msra.mxu0 0.0
      %1143 = vmatprep.subr.mxu0 0.0
      %1144 = vmatpush1.msra.mxu0 0.0
      %1145 = vmatprep.subr.mxu0 0.0
      %1146 = vmatpush1.msra.mxu0 0.0
      %1147 = vmatprep.subr.mxu0 0.0
      %1148 = vmatpush1.msra.mxu0 0.0
      %1149 = vmatprep.subr.mxu0 0.0
      %1150 = vmatpush1.msra.mxu0 0.0
      %1151 = vmatprep.subr.mxu0 0.0
      %1152 = vmatpush1.msra.mxu0 0.0
      %1153 = vmatprep.subr.mxu0 0.0
      %1154 = vmatpush1.msra.mxu0 0.0
      %1155 = vmatprep.subr.mxu0 0.0
      %1156 = vmatpush1.msra.mxu0 0.0
      %1157 = vmatprep.subr.mxu0 0.0
      %1158 = vmatpush1.msra.mxu0 0.0
      %1159 = vmatprep.subr.mxu0 0.0
      %1160 = vmatpush1.msra.mxu0 0.0
      %1161 = vmatprep.subr.mxu0 0.0
      %1162 = vmatpush1.msra.mxu0 0.0
      %1163 = vmatprep.subr.mxu0 0.0
      %1164 = vmatpush1.msra.mxu0 0.0
      %1165 = vmatprep.subr.mxu0 0.0
      %1166 = vmatpush1.msra.mxu0 0.0
      %1167 = vmatprep.subr.mxu0 0.0
      %1168 = vmatpush1.msra.mxu0 0.0
      %1169 = vmatprep.subr.mxu0 0.0
      %1170 = vmatpush1.msra.mxu0 0.0
      %1171 = vmatprep.subr.mxu0 0.0
      %1172 = vmatpush1.msra.mxu0 0.0
      %1173 = vmatprep.subr.mxu0 0.0
      %1174 = vmatpush1.msra.mxu0 0.0
      %1175 = vmatprep.subr.mxu0 0.0
      %1176 = vmatpush1.msra.mxu0 0.0
      %1177 = vmatprep.subr.mxu0 0.0
      %1178 = vmatpush1.msra.mxu0 0.0
      %1179 = vmatprep.mubr.f32.mxu0 0.0
      %1180 = vmatmul.mubr.f32.gmra.mrb[0].mxu0 %v1104
      %v1181 = vpop.f32.mrb[0].mxu0
      %v1182 = vadd.f32 0.0, %v1181
      %v1183 = vpop.f32.mrb[0].mxu0
      %1184 = vmatprep.mubr.f32.mxu0 0.0
      %1185 = vmatmul.mubr.f32.gmra.mrb[0].mxu0 %v1107
      %v1186 = vpop.f32.mrb[0].mxu0
      %v1187 = vadd.f32 0.0, %v1186
      %v1188 = vpop.f32.mrb[0].mxu0
      %1189 = vmatprep.mubr.f32.mxu0 0.0
      %1190 = vmatmul.mubr.f32.gmra.mrb[0].mxu0 %v1110
      %v1191 = vpop.f32.mrb[0].mxu0
      %v1192 = vadd.f32 0.0, %v1191
      %v1193 = vpop.f32.mrb[0].mxu0
      %1194 = vmatprep.mubr.f32.mxu0 0.0
      %1195 = vmatmul.mubr.f32.gmra.mrb[0].mxu0 %v1113
      %v1196 = vpop.f32.mrb[0].mxu0
      %v1197 = vadd.f32 0.0, %v1196
      %v1198 = vpop.f32.mrb[0].mxu0
      %1199 = vdwg.mxu0
      %v1200 = vadd.f32 %v1087, %v1182
      %v1201 = vadd.f32 %v1088, %v1187
      %v1202 = vadd.f32 %v1089, %v1192
      %v1203 = vadd.f32 %v1090, %v1197
      %v1204 = vld [vmem:[#allocation2 + $0x30] sm:$0xff]
      %v1205 = vld [vmem:[#allocation2 + $0x38] sm:$0xff]
      %v1206 = vld [vmem:[#allocation2 + $0x40] sm:$0xff]
      %v1207 = vld [vmem:[#allocation2 + $0x48] sm:$0x3f]
      %v1208 = vld [vmem:[%s2 + $0x1c0] sm:$0xff]
      %v1209 = vld [vmem:[%s2 + $0x1c8] sm:$0xff]
      %v1210 = vld [vmem:[%s2 + $0x1d0] sm:$0xff]
      %v1211 = vld [vmem:[%s2 + $0x1d8] sm:$0xff]
      %v1212 = vld [vmem:[%s2 + $0x1e0] sm:$0xff]
      %v1213 = vld [vmem:[%s2 + $0x1e8] sm:$0xff]
      %v1214 = vld [vmem:[%s2 + $0x1f0] sm:$0xff]
      %v1215 = vld [vmem:[%s2 + $0x1f8] sm:$0xff]
      %v1217 = vsel %vm399, %v1204, 0
      %v1220 = vsel %vm399, %v1205, 0
      %v1223 = vsel %vm399, %v1206, 0
      %v1226 = vsel %vm399, %v1207, 0
      %1228 = vmatprep.subr.mxu0 0.0
      %1229 = vmatpush1.msra.mxu0 %v1208
      %1230 = vmatprep.subr.mxu0 0.0
      %1231 = vmatpush1.msra.mxu0 %v1209
      %1232 = vmatprep.subr.mxu0 0.0
      %1233 = vmatpush1.msra.mxu0 %v1210
      %1234 = vmatprep.subr.mxu0 0.0
      %1235 = vmatpush1.msra.mxu0 %v1211
      %1236 = vmatprep.subr.mxu0 0.0
      %1237 = vmatpush1.msra.mxu0 %v1212
      %1238 = vmatprep.subr.mxu0 0.0
      %1239 = vmatpush1.msra.mxu0 %v1213
      %1240 = vmatprep.subr.mxu0 0.0
      %1241 = vmatpush1.msra.mxu0 %v1214
      %1242 = vmatprep.subr.mxu0 0.0
      %1243 = vmatpush1.msra.mxu0 %v1215
      %1244 = vmatprep.subr.mxu0 0.0
      %1245 = vmatpush1.msra.mxu0 0.0
      %1246 = vmatprep.subr.mxu0 0.0
      %1247 = vmatpush1.msra.mxu0 0.0
      %1248 = vmatprep.subr.mxu0 0.0
      %1249 = vmatpush1.msra.mxu0 0.0
      %1250 = vmatprep.subr.mxu0 0.0
      %1251 = vmatpush1.msra.mxu0 0.0
      %1252 = vmatprep.subr.mxu0 0.0
      %1253 = vmatpush1.msra.mxu0 0.0
      %1254 = vmatprep.subr.mxu0 0.0
      %1255 = vmatpush1.msra.mxu0 0.0
      %1256 = vmatprep.subr.mxu0 0.0
      %1257 = vmatpush1.msra.mxu0 0.0
      %1258 = vmatprep.subr.mxu0 0.0
      %1259 = vmatpush1.msra.mxu0 0.0
      %1260 = vmatprep.subr.mxu0 0.0
      %1261 = vmatpush1.msra.mxu0 0.0
      %1262 = vmatprep.subr.mxu0 0.0
      %1263 = vmatpush1.msra.mxu0 0.0
      %1264 = vmatprep.subr.mxu0 0.0
      %1265 = vmatpush1.msra.mxu0 0.0
      %1266 = vmatprep.subr.mxu0 0.0
      %1267 = vmatpush1.msra.mxu0 0.0
      %1268 = vmatprep.subr.mxu0 0.0
      %1269 = vmatpush1.msra.mxu0 0.0
      %1270 = vmatprep.subr.mxu0 0.0
      %1271 = vmatpush1.msra.mxu0 0.0
      %1272 = vmatprep.subr.mxu0 0.0
      %1273 = vmatpush1.msra.mxu0 0.0
      %1274 = vmatprep.subr.mxu0 0.0
      %1275 = vmatpush1.msra.mxu0 0.0
      %1276 = vmatprep.subr.mxu0 0.0
      %1277 = vmatpush1.msra.mxu0 0.0
      %1278 = vmatprep.subr.mxu0 0.0
      %1279 = vmatpush1.msra.mxu0 0.0
      %1280 = vmatprep.subr.mxu0 0.0
      %1281 = vmatpush1.msra.mxu0 0.0
      %1282 = vmatprep.subr.mxu0 0.0
      %1283 = vmatpush1.msra.mxu0 0.0
      %1284 = vmatprep.subr.mxu0 0.0
      %1285 = vmatpush1.msra.mxu0 0.0
      %1286 = vmatprep.subr.mxu0 0.0
      %1287 = vmatpush1.msra.mxu0 0.0
      %1288 = vmatprep.subr.mxu0 0.0
      %1289 = vmatpush1.msra.mxu0 0.0
      %1290 = vmatprep.subr.mxu0 0.0
      %1291 = vmatpush1.msra.mxu0 0.0
      %1292 = vmatprep.mubr.f32.mxu0 0.0
      %1293 = vmatmul.mubr.f32.gmra.mrb[0].mxu0 %v1217
      %v1294 = vpop.f32.mrb[0].mxu0
      %v1295 = vadd.f32 0.0, %v1294
      %v1296 = vpop.f32.mrb[0].mxu0
      %1297 = vmatprep.mubr.f32.mxu0 0.0
      %1298 = vmatmul.mubr.f32.gmra.mrb[0].mxu0 %v1220
      %v1299 = vpop.f32.mrb[0].mxu0
      %v1300 = vadd.f32 0.0, %v1299
      %v1301 = vpop.f32.mrb[0].mxu0
      %1302 = vmatprep.mubr.f32.mxu0 0.0
      %1303 = vmatmul.mubr.f32.gmra.mrb[0].mxu0 %v1223
      %v1304 = vpop.f32.mrb[0].mxu0
      %v1305 = vadd.f32 0.0, %v1304
      %v1306 = vpop.f32.mrb[0].mxu0
      %1307 = vmatprep.mubr.f32.mxu0 0.0
      %1308 = vmatmul.mubr.f32.gmra.mrb[0].mxu0 %v1226
      %v1309 = vpop.f32.mrb[0].mxu0
      %v1310 = vadd.f32 0.0, %v1309
      %v1311 = vpop.f32.mrb[0].mxu0
      %1312 = vdwg.mxu0
      %v1313 = vadd.f32 %v1200, %v1295
      %v1314 = vadd.f32 %v1201, %v1300
      %v1315 = vadd.f32 %v1202, %v1305
      %v1316 = vadd.f32 %v1203, %v1310
      %v1317 = vld [vmem:[#allocation2 + $0x7] sm:$0xff]
      %v1318 = vld [vmem:[#allocation2 + $0xf] sm:$0xff]
      %v1319 = vld [vmem:[#allocation2 + $0x17] sm:$0xff]
      %v1320 = vld [vmem:[#allocation2 + $0x1f] sm:$0x3f]
      %v1321 = vld [vmem:[%s2 + $0x200] sm:$0xff]
      %v1322 = vld [vmem:[%s2 + $0x208] sm:$0xff]
      %v1323 = vld [vmem:[%s2 + $0x210] sm:$0xff]
      %v1324 = vld [vmem:[%s2 + $0x218] sm:$0xff]
      %v1325 = vld [vmem:[%s2 + $0x220] sm:$0xff]
      %v1326 = vld [vmem:[%s2 + $0x228] sm:$0xff]
      %v1327 = vld [vmem:[%s2 + $0x230] sm:$0xff]
      %v1328 = vld [vmem:[%s2 + $0x238] sm:$0xff]
      %v1330 = vsel %vm399, %v1317, 0
      %v1333 = vsel %vm399, %v1318, 0
      %v1336 = vsel %vm399, %v1319, 0
      %v1339 = vsel %vm399, %v1320, 0
      %1341 = vmatprep.subr.mxu0 0.0
      %1342 = vmatpush1.msra.mxu0 %v1321
      %1343 = vmatprep.subr.mxu0 0.0
      %1344 = vmatpush1.msra.mxu0 %v1322
      %1345 = vmatprep.subr.mxu0 0.0
      %1346 = vmatpush1.msra.mxu0 %v1323
      %1347 = vmatprep.subr.mxu0 0.0
      %1348 = vmatpush1.msra.mxu0 %v1324
      %1349 = vmatprep.subr.mxu0 0.0
      %1350 = vmatpush1.msra.mxu0 %v1325
      %1351 = vmatprep.subr.mxu0 0.0
      %1352 = vmatpush1.msra.mxu0 %v1326
      %1353 = vmatprep.subr.mxu0 0.0
      %1354 = vmatpush1.msra.mxu0 %v1327
      %1355 = vmatprep.subr.mxu0 0.0
      %1356 = vmatpush1.msra.mxu0 %v1328
      %1357 = vmatprep.subr.mxu0 0.0
      %1358 = vmatpush1.msra.mxu0 0.0
      %1359 = vmatprep.subr.mxu0 0.0
      %1360 = vmatpush1.msra.mxu0 0.0
      %1361 = vmatprep.subr.mxu0 0.0
      %1362 = vmatpush1.msra.mxu0 0.0
      %1363 = vmatprep.subr.mxu0 0.0
      %1364 = vmatpush1.msra.mxu0 0.0
      %1365 = vmatprep.subr.mxu0 0.0
      %1366 = vmatpush1.msra.mxu0 0.0
      %1367 = vmatprep.subr.mxu0 0.0
      %1368 = vmatpush1.msra.mxu0 0.0
      %1369 = vmatprep.subr.mxu0 0.0
      %1370 = vmatpush1.msra.mxu0 0.0
      %1371 = vmatprep.subr.mxu0 0.0
      %1372 = vmatpush1.msra.mxu0 0.0
      %1373 = vmatprep.subr.mxu0 0.0
      %1374 = vmatpush1.msra.mxu0 0.0
      %1375 = vmatprep.subr.mxu0 0.0
      %1376 = vmatpush1.msra.mxu0 0.0
      %1377 = vmatprep.subr.mxu0 0.0
      %1378 = vmatpush1.msra.mxu0 0.0
      %1379 = vmatprep.subr.mxu0 0.0
      %1380 = vmatpush1.msra.mxu0 0.0
      %1381 = vmatprep.subr.mxu0 0.0
      %1382 = vmatpush1.msra.mxu0 0.0
      %1383 = vmatprep.subr.mxu0 0.0
      %1384 = vmatpush1.msra.mxu0 0.0
      %1385 = vmatprep.subr.mxu0 0.0
      %1386 = vmatpush1.msra.mxu0 0.0
      %1387 = vmatprep.subr.mxu0 0.0
      %1388 = vmatpush1.msra.mxu0 0.0
      %1389 = vmatprep.subr.mxu0 0.0
      %1390 = vmatpush1.msra.mxu0 0.0
      %1391 = vmatprep.subr.mxu0 0.0
      %1392 = vmatpush1.msra.mxu0 0.0
      %1393 = vmatprep.subr.mxu0 0.0
      %1394 = vmatpush1.msra.mxu0 0.0
      %1395 = vmatprep.subr.mxu0 0.0
      %1396 = vmatpush1.msra.mxu0 0.0
      %1397 = vmatprep.subr.mxu0 0.0
      %1398 = vmatpush1.msra.mxu0 0.0
      %1399 = vmatprep.subr.mxu0 0.0
      %1400 = vmatpush1.msra.mxu0 0.0
      %1401 = vmatprep.subr.mxu0 0.0
      %1402 = vmatpush1.msra.mxu0 0.0
      %1403 = vmatprep.subr.mxu0 0.0
      %1404 = vmatpush1.msra.mxu0 0.0
      %1405 = vmatprep.mubr.f32.mxu0 0.0
      %1406 = vmatmul.mubr.f32.gmra.mrb[0].mxu0 %v1330
      %v1407 = vpop.f32.mrb[0].mxu0
      %v1408 = vadd.f32 0.0, %v1407
      %v1409 = vpop.f32.mrb[0].mxu0
      %1410 = vmatprep.mubr.f32.mxu0 0.0
      %1411 = vmatmul.mubr.f32.gmra.mrb[0].mxu0 %v1333
      %v1412 = vpop.f32.mrb[0].mxu0
      %v1413 = vadd.f32 0.0, %v1412
      %v1414 = vpop.f32.mrb[0].mxu0
      %1415 = vmatprep.mubr.f32.mxu0 0.0
      %1416 = vmatmul.mubr.f32.gmra.mrb[0].mxu0 %v1336
      %v1417 = vpop.f32.mrb[0].mxu0
      %v1418 = vadd.f32 0.0, %v1417
      %v1419 = vpop.f32.mrb[0].mxu0
      %1420 = vmatprep.mubr.f32.mxu0 0.0
      %1421 = vmatmul.mubr.f32.gmra.mrb[0].mxu0 %v1339
      %v1422 = vpop.f32.mrb[0].mxu0
      %v1423 = vadd.f32 0.0, %v1422
      %v1424 = vpop.f32.mrb[0].mxu0
      %1425 = vdwg.mxu0
      %v1426 = vadd.f32 %v1313, %v1408
      %v1427 = vadd.f32 %v1314, %v1413
      %v1428 = vadd.f32 %v1315, %v1418
      %v1429 = vadd.f32 %v1316, %v1423
      %v1430 = vmax.f32 %v1426, 0.0
      %v1431 = vmax.f32 %v1427, 0.0
      %v1432 = vmax.f32 %v1428, 0.0
      %v1433 = vmax.f32 %v1429, 0.0
      %1434 = vst [vmem:[%s170] sm:$0xff] %v1430
      %1435 = vst [vmem:[%s170 + $0x8] sm:$0xff] %v1431
      %1436 = vst [vmem:[%s170 + $0x10] sm:$0xff] %v1432
      %1437 = vst [vmem:[%s170 + $0x18] sm:$0x3f] %v1433
      %p1438 = scmp.lt.s32.totalorder %s14, 1
      %s1439 = scalar_select %p1438, %s14, 1
      %s1440 = smul.addr %s1439, 4
      %s1441 = smul.addr %s1440, 8
      %s1442 = scalar_lea.vmem %s3, %s1441
      // Predicated region
      $region33: #{extra_block_forward.1} parent=31 // pred_check
        %p1443 = pneg %p100
      $region34: #{extra_block_forward.1} parent=31 // pred_check_branch
        %1445 = sbr.rel (%p1443) target = $region36
      $region35: #{extra_block_forward.1} parent=31 // pred_region
        _
      $region36: #{extra_block_forward.1} parent=31 // pred_fallthru
        _
    $region32: #{extra_block_forward.1} parent=5 // pred_fallthru
      _
    %p1446 = scmp.le.s32.totalorder 2, %s9
    // Predicated region
    $region37: #{extra_block_forward.1} parent=5 // pred_check
      %p1447 = pneg %p1446
    $region38: #{extra_block_forward.1} parent=5 // pred_check_branch
      %1449 = sbr.rel (%p1447) target = $region40
    $region39: #{extra_block_forward.1} parent=5 // pred_region
      %s1450 = ssub.s32 %s9, 2
      // Predicated region
      $region41: #{extra_block_forward.1} parent=39 // pred_check
        %p1451 = pneg %p106
      $region42: #{extra_block_forward.1} parent=39 // pred_check_branch
        %1453 = sbr.rel (%p1451) target = $region44
      $region43: #{extra_block_forward.1} parent=39 // pred_region
        %p1454 = scmp.lt.s32.totalorder %s15, 1
        %s1455 = scalar_select %p1454, %s15, 1
        %s1456 = smul.addr %s1455, 4
        %s1457 = smul.addr %s1456, 8
        %s1458 = scalar_lea.vmem %s3, %s1457
      $region44: #{extra_block_forward.1} parent=39 // pred_fallthru
        _
    $region40: #{extra_block_forward.1} parent=5 // pred_fallthru
      _
  $region6: #{extra_block_forward.1} parent=0 // loop_footer
    %s13 = sadd.s32 1, %s9
  $region7: #{extra_block_forward.1} parent=0 // loop_footer_branch
    %8 = sbr.rel target = $region3
  $region8: #{extra_block_forward.1} parent=0 // loop_exit
    _

</llo_original>
